<compile_context>
chip_gen: v6e
topology: v6e:2x2x1
jax: 0.10.0
libtpu: 0.0.40
codegen_flags: <defaults>
</compile_context>

<pallas_src>
import functools

import jax
import jax.numpy as jnp
from jax.experimental import pallas as pl
from jax.experimental.pallas import tpu as pltpu


def _round_up(x, m):
    return ((x + m - 1) // m) * m


def aen_kernel(x_ref, w1_ref, b1_ref, w2_ref, b2_ref, w3_ref, b3_ref, w4_ref,
               out_ref, phi_ref):
    # Cast x to bf16 in-kernel (no separate XLA pad/cast pass over x).
    x = x_ref[...].astype(jnp.bfloat16)
    # fcb1: Linear(dim_in, 30) + ReLU    (bf16 matmul, f32 accumulation)
    h = jnp.dot(x, w1_ref[...], preferred_element_type=jnp.float32)
    h = jnp.maximum(h + b1_ref[...], 0.0)
    # fcb2: Linear(30, 30) + ReLU
    h = jnp.dot(h.astype(jnp.bfloat16), w2_ref[...],
                preferred_element_type=jnp.float32)
    h = jnp.maximum(h + b2_ref[...], 0.0)
    # fcb3: Linear(30, 128) + ReLU
    h = jnp.dot(h.astype(jnp.bfloat16), w3_ref[...],
                preferred_element_type=jnp.float32)
    h = jnp.maximum(h + b3_ref[...], 0.0)
    phi_ref[...] = h  # self.phi (f32)
    # head: Linear(128, action_num, bias=False) + sigmoid.
    # w4 / out are action_num wide (no lane padding): sigmoid + store only
    # cover the valid columns.
    logits = jnp.dot(h.astype(jnp.bfloat16), w4_ref[...],
                     preferred_element_type=jnp.float32)
    out_ref[...] = jax.nn.sigmoid(logits)


def prepare_params(params):
    """One-time prep: pad hidden widths 30->32 and cast weights to bf16."""
    w1, b1, w2, b2, w3, b3, w4 = params
    h1, h2 = w1.shape[1], w2.shape[1]            # 30, 30
    h1p, h2p = _round_up(h1, 8), _round_up(h2, 8)  # 32, 32
    w1p = jnp.pad(w1, ((0, 0), (0, h1p - h1))).astype(jnp.bfloat16)
    b1p = jnp.pad(b1, ((0, 0), (0, h1p - h1)))
    w2p = jnp.pad(w2, ((0, h1p - h1), (0, h2p - h2))).astype(jnp.bfloat16)
    b2p = jnp.pad(b2, ((0, 0), (0, h2p - h2)))
    w3p = jnp.pad(w3, ((0, h2p - h2), (0, 0))).astype(jnp.bfloat16)
    b3p = b3
    w4p = w4.astype(jnp.bfloat16)                # keep narrow action_num width
    return (w1p, b1p, w2p, b2p, w3p, b3p, w4p)


@functools.partial(jax.jit, static_argnames=("tile_m",))
def aen_forward(x, prepped, *, tile_m=256):
    """x: [B, dim_in] float32; prepped from prepare_params().

    Returns (sigmoid(head(phi)) [B, action_num] f32, phi [B, 128] f32)."""
    w1p, b1p, w2p, b2p, w3p, b3p, w4p = prepped
    B, dim_in = x.shape
    h1p, h2p, h3 = w1p.shape[1], w2p.shape[1], w3p.shape[1]  # 32, 32, 128
    act = w4p.shape[1]                                       # action_num

    # Batch tile: multiple of 16 (bf16 sublane packing), small enough that the
    # grid has several steps (pipelining / megacore), capped at tile_m.
    tm = min(_round_up(tile_m, 16), _round_up(B, 16))
    grid = (pl.cdiv(B, tm),)

    def x_map(i):
        return (i, 0)

    def const_map(i):
        return (0, 0)

    out_shape = (
        jax.ShapeDtypeStruct((B, act), jnp.float32),  # sigmoid(head(phi))
        jax.ShapeDtypeStruct((B, h3), jnp.float32),   # phi
    )

    out, phi = pl.pallas_call(
        aen_kernel,
        out_shape=out_shape,
        grid_spec=pltpu.PrefetchScalarGridSpec(
            num_scalar_prefetch=0,
            grid=grid,
            in_specs=[
                pl.BlockSpec((tm, dim_in), x_map),
                pl.BlockSpec((dim_in, h1p), const_map),
                pl.BlockSpec((1, h1p), const_map),
                pl.BlockSpec((h1p, h2p), const_map),
                pl.BlockSpec((1, h2p), const_map),
                pl.BlockSpec((h2p, h3), const_map),
                pl.BlockSpec((1, h3), const_map),
                pl.BlockSpec((h3, act), const_map),
            ],
            out_specs=[
                pl.BlockSpec((tm, act), x_map),
                pl.BlockSpec((tm, h3), x_map),
            ],
        ),
        compiler_params=pltpu.CompilerParams(
            dimension_semantics=("parallel",)),
    )(x, w1p, b1p, w2p, b2p, w3p, b3p, w4p)

    return out, phi


def init_params(key, dim_in, action_num):
    """Deterministic init mimicking nn.Linear default (U[-1/sqrt(fan_in), ..])."""
    dims = [(dim_in, 30), (30, 30), (30, 128)]
    params = []
    keys = jax.random.split(key, 2 * len(dims) + 1)
    for idx, (fi, fo) in enumerate(dims):
        bound = 1.0 / (fi ** 0.5)
        w = jax.random.uniform(keys[2 * idx], (fi, fo), jnp.float32, -bound, bound)
        b = jax.random.uniform(keys[2 * idx + 1], (1, fo), jnp.float32, -bound, bound)
        params += [w, b]
    bound = 1.0 / (128.0 ** 0.5)
    w4 = jax.random.uniform(keys[-1], (128, action_num), jnp.float32, -bound, bound)
    params.append(w4)
    return tuple(params)


def aen_reference(x, params):
    """Pure-f32 reference matching the PyTorch module semantics."""
    w1, b1, w2, b2, w3, b3, w4 = params
    h = jnp.maximum(x @ w1 + b1, 0.0)
    h = jnp.maximum(h @ w2 + b2, 0.0)
    h = jnp.maximum(h @ w3 + b3, 0.0)
    return jax.nn.sigmoid(h @ w4), h


if __name__ == "__main__":
    dim_in, action_num, batch = 32, 8, 1024  # grid = (4,) at tile_m=256
    key = jax.random.PRNGKey(0)
    kx, kp = jax.random.split(key)
    x = jax.random.normal(kx, (batch, dim_in), jnp.float32)
    params = init_params(kp, dim_in, action_num)
    prepped = prepare_params(params)   # one-time padding / bf16 cast

    out, phi = aen_forward(x, prepped, tile_m=256)
    out, phi = jax.block_until_ready((out, phi))

    ref_out, ref_phi = aen_reference(x, params)
    assert out.shape == (batch, action_num)
    assert phi.shape == (batch, 128)
    # Tolerances relaxed vs. the pure-f32 reference because the kernel uses
    # bf16 operands on the MXU (with f32 accumulation).
    assert jnp.allclose(out, ref_out, atol=2e-2, rtol=2e-2)
    assert jnp.allclose(phi, ref_phi, atol=5e-2, rtol=5e-2)
    print("KERNEL_OK")
</pallas_src>

<mosaic_0001>
module attributes {stable_mosaic.version = 11 : i64} {
  func.func @aen_kernel(%arg0: i32, %arg1: memref<256x32xf32, #tpu.memory_space<vmem>>, %arg2: memref<32x32xbf16, #tpu.memory_space<vmem>>, %arg3: memref<1x32xf32, #tpu.memory_space<vmem>>, %arg4: memref<32x32xbf16, #tpu.memory_space<vmem>>, %arg5: memref<1x32xf32, #tpu.memory_space<vmem>>, %arg6: memref<32x128xbf16, #tpu.memory_space<vmem>>, %arg7: memref<1x128xf32, #tpu.memory_space<vmem>>, %arg8: memref<128x8xbf16, #tpu.memory_space<vmem>>, %arg9: memref<256x8xf32, #tpu.memory_space<vmem>>, %arg10: memref<256x128xf32, #tpu.memory_space<vmem>>) attributes {dimension_semantics = [#tpu.dimension_semantics<parallel>], iteration_bounds = array<i64: 4>, scalar_prefetch = 0 : i64, scratch_operands = 0 : i64, tpu.core_type = #tpu.core_type<tc>, window_params = [{transform_indices = @transform_0, window_bounds = array<i64: 256, 32>}, {pipeline_mode = #tpu.pipeline_mode<synchronous>, transform_indices = @transform_1, window_bounds = array<i64: 32, 32>}, {pipeline_mode = #tpu.pipeline_mode<synchronous>, transform_indices = @transform_2, window_bounds = array<i64: 1, 32>}, {pipeline_mode = #tpu.pipeline_mode<synchronous>, transform_indices = @transform_3, window_bounds = array<i64: 32, 32>}, {pipeline_mode = #tpu.pipeline_mode<synchronous>, transform_indices = @transform_4, window_bounds = array<i64: 1, 32>}, {pipeline_mode = #tpu.pipeline_mode<synchronous>, transform_indices = @transform_5, window_bounds = array<i64: 32, 128>}, {pipeline_mode = #tpu.pipeline_mode<synchronous>, transform_indices = @transform_6, window_bounds = array<i64: 1, 128>}, {pipeline_mode = #tpu.pipeline_mode<synchronous>, transform_indices = @transform_7, window_bounds = array<i64: 128, 8>}, {transform_indices = @transform_8, window_bounds = array<i64: 256, 8>}, {transform_indices = @transform_9, window_bounds = array<i64: 256, 128>}]} {
    %c0 = arith.constant 0 : index
    %c0_0 = arith.constant 0 : index
    %0 = vector.load %arg1[%c0, %c0_0] : memref<256x32xf32, #tpu.memory_space<vmem>>, vector<256x32xf32>
    %1 = arith.truncf %0 : vector<256x32xf32> to vector<256x32xbf16>
    %c0_1 = arith.constant 0 : index
    %c0_2 = arith.constant 0 : index
    %2 = vector.load %arg2[%c0_1, %c0_2] : memref<32x32xbf16, #tpu.memory_space<vmem>>, vector<32x32xbf16>
    %cst = arith.constant dense<0.000000e+00> : vector<256x32xf32>
    %3 = tpu.matmul %1, %2, %cst {dimension_numbers = #tpu.dot_dimension_numbers<[1], [0], [0], [1], [0, 0, 1, 1], [], []>} : vector<256x32xbf16>, vector<32x32xbf16>, vector<256x32xf32> -> vector<256x32xf32>
    %c0_3 = arith.constant 0 : index
    %c0_4 = arith.constant 0 : index
    %4 = vector.load %arg3[%c0_3, %c0_4] : memref<1x32xf32, #tpu.memory_space<vmem>>, vector<1x32xf32>
    %5 = vector.broadcast %4 : vector<1x32xf32> to vector<256x32xf32>
    %6 = arith.addf %3, %5 : vector<256x32xf32>
    %cst_5 = arith.constant 0.000000e+00 : f32
    %7 = vector.broadcast %cst_5 : f32 to vector<256x32xf32>
    %8 = arith.maximumf %6, %7 : vector<256x32xf32>
    %9 = arith.truncf %8 : vector<256x32xf32> to vector<256x32xbf16>
    %c0_6 = arith.constant 0 : index
    %c0_7 = arith.constant 0 : index
    %10 = vector.load %arg4[%c0_6, %c0_7] : memref<32x32xbf16, #tpu.memory_space<vmem>>, vector<32x32xbf16>
    %cst_8 = arith.constant dense<0.000000e+00> : vector<256x32xf32>
    %11 = tpu.matmul %9, %10, %cst_8 {dimension_numbers = #tpu.dot_dimension_numbers<[1], [0], [0], [1], [0, 0, 1, 1], [], []>} : vector<256x32xbf16>, vector<32x32xbf16>, vector<256x32xf32> -> vector<256x32xf32>
    %c0_9 = arith.constant 0 : index
    %c0_10 = arith.constant 0 : index
    %12 = vector.load %arg5[%c0_9, %c0_10] : memref<1x32xf32, #tpu.memory_space<vmem>>, vector<1x32xf32>
    %13 = vector.broadcast %12 : vector<1x32xf32> to vector<256x32xf32>
    %14 = arith.addf %11, %13 : vector<256x32xf32>
    %cst_11 = arith.constant 0.000000e+00 : f32
    %15 = vector.broadcast %cst_11 : f32 to vector<256x32xf32>
    %16 = arith.maximumf %14, %15 : vector<256x32xf32>
    %17 = arith.truncf %16 : vector<256x32xf32> to vector<256x32xbf16>
    %c0_12 = arith.constant 0 : index
    %c0_13 = arith.constant 0 : index
    %18 = vector.load %arg6[%c0_12, %c0_13] : memref<32x128xbf16, #tpu.memory_space<vmem>>, vector<32x128xbf16>
    %cst_14 = arith.constant dense<0.000000e+00> : vector<256x128xf32>
    %19 = tpu.matmul %17, %18, %cst_14 {dimension_numbers = #tpu.dot_dimension_numbers<[1], [0], [0], [1], [0, 0, 1, 1], [], []>} : vector<256x32xbf16>, vector<32x128xbf16>, vector<256x128xf32> -> vector<256x128xf32>
    %c0_15 = arith.constant 0 : index
    %c0_16 = arith.constant 0 : index
    %20 = vector.load %arg7[%c0_15, %c0_16] : memref<1x128xf32, #tpu.memory_space<vmem>>, vector<1x128xf32>
    %21 = vector.broadcast %20 : vector<1x128xf32> to vector<256x128xf32>
    %22 = arith.addf %19, %21 : vector<256x128xf32>
    %cst_17 = arith.constant 0.000000e+00 : f32
    %23 = vector.broadcast %cst_17 : f32 to vector<256x128xf32>
    %24 = arith.maximumf %22, %23 : vector<256x128xf32>
    %c0_18 = arith.constant 0 : index
    %c0_19 = arith.constant 0 : index
    %25 = vector.load %arg10[%c0_18, %c0_19] : memref<256x128xf32, #tpu.memory_space<vmem>>, vector<256x128xf32>
    tpu.vector_store %arg10[%c0_18, %c0_19], %24 {strides = array<i32>} : memref<256x128xf32, #tpu.memory_space<vmem>>, vector<256x128xf32>,
    %26 = arith.truncf %24 : vector<256x128xf32> to vector<256x128xbf16>
    %c0_20 = arith.constant 0 : index
    %c0_21 = arith.constant 0 : index
    %27 = vector.load %arg8[%c0_20, %c0_21] : memref<128x8xbf16, #tpu.memory_space<vmem>>, vector<128x8xbf16>
    %cst_22 = arith.constant dense<0.000000e+00> : vector<256x8xf32>
    %28 = tpu.matmul %26, %27, %cst_22 {dimension_numbers = #tpu.dot_dimension_numbers<[1], [0], [0], [1], [0, 0, 1, 1], [], []>} : vector<256x128xbf16>, vector<128x8xbf16>, vector<256x8xf32> -> vector<256x8xf32>
    %29 = arith.negf %28 : vector<256x8xf32>
    %30 = math.exp %29 : vector<256x8xf32>
    %cst_23 = arith.constant 1.000000e+00 : f32
    %31 = vector.broadcast %cst_23 : f32 to vector<256x8xf32>
    %32 = arith.addf %31, %30 : vector<256x8xf32>
    %33 = arith.divf %31, %32 : vector<256x8xf32>
    %c0_24 = arith.constant 0 : index
    %c0_25 = arith.constant 0 : index
    %34 = vector.load %arg9[%c0_24, %c0_25] : memref<256x8xf32, #tpu.memory_space<vmem>>, vector<256x8xf32>
    tpu.vector_store %arg9[%c0_24, %c0_25], %33 {strides = array<i32>} : memref<256x8xf32, #tpu.memory_space<vmem>>, vector<256x8xf32>,
    return
  }
  func.func @transform_0(%arg0: i32) -> (i32, i32) {
    %c0_i32 = arith.constant 0 : i32
    %c0_i32_0 = arith.constant 0 : i32
    return %arg0, %c0_i32 : i32, i32
  }
  func.func @transform_1(%arg0: i32) -> (i32, i32) {
    %c0_i32 = arith.constant 0 : i32
    %c0_i32_0 = arith.constant 0 : i32
    %c0_i32_1 = arith.constant 0 : i32
    return %c0_i32, %c0_i32_0 : i32, i32
  }
  func.func @transform_2(%arg0: i32) -> (i32, i32) {
    %c0_i32 = arith.constant 0 : i32
    %c0_i32_0 = arith.constant 0 : i32
    %c0_i32_1 = arith.constant 0 : i32
    return %c0_i32, %c0_i32_0 : i32, i32
  }
  func.func @transform_3(%arg0: i32) -> (i32, i32) {
    %c0_i32 = arith.constant 0 : i32
    %c0_i32_0 = arith.constant 0 : i32
    %c0_i32_1 = arith.constant 0 : i32
    return %c0_i32, %c0_i32_0 : i32, i32
  }
  func.func @transform_4(%arg0: i32) -> (i32, i32) {
    %c0_i32 = arith.constant 0 : i32
    %c0_i32_0 = arith.constant 0 : i32
    %c0_i32_1 = arith.constant 0 : i32
    return %c0_i32, %c0_i32_0 : i32, i32
  }
  func.func @transform_5(%arg0: i32) -> (i32, i32) {
    %c0_i32 = arith.constant 0 : i32
    %c0_i32_0 = arith.constant 0 : i32
    %c0_i32_1 = arith.constant 0 : i32
    return %c0_i32, %c0_i32_0 : i32, i32
  }
  func.func @transform_6(%arg0: i32) -> (i32, i32) {
    %c0_i32 = arith.constant 0 : i32
    %c0_i32_0 = arith.constant 0 : i32
    %c0_i32_1 = arith.constant 0 : i32
    return %c0_i32, %c0_i32_0 : i32, i32
  }
  func.func @transform_7(%arg0: i32) -> (i32, i32) {
    %c0_i32 = arith.constant 0 : i32
    %c0_i32_0 = arith.constant 0 : i32
    %c0_i32_1 = arith.constant 0 : i32
    return %c0_i32, %c0_i32_0 : i32, i32
  }
  func.func @transform_8(%arg0: i32) -> (i32, i32) {
    %c0_i32 = arith.constant 0 : i32
    %c0_i32_0 = arith.constant 0 : i32
    return %arg0, %c0_i32 : i32, i32
  }
  func.func @transform_9(%arg0: i32) -> (i32, i32) {
    %c0_i32 = arith.constant 0 : i32
    %c0_i32_0 = arith.constant 0 : i32
    return %arg0, %c0_i32 : i32, i32
  }
}

</mosaic_0001>

<llo_original>
// kernel: aen_forward.1
$region0: #{aen_forward.1}
  #allocation0 [shape = 'u32[]', space=smem, size = 0x4, offset = 0x4, fixed_abs, tag = 'smem constant byte address 0x4 - core index']
  #allocation1 [shape = 'u32[144,128]{1,0:T(1,128)}', space=vmem, size = 0x12000, scoped, tag = 'internal scratch']
  %s0 = inlined_call_operand.vmem [shape: f32[1024,32], index: 0, kind: input, shape index: {}]
  %s1 = inlined_call_operand.vmem [shape: bf16[32,32], index: 1, kind: input, shape index: {}]
  %s2 = inlined_call_operand.vmem [shape: f32[1,32], index: 2, kind: input, shape index: {}]
  %s3 = inlined_call_operand.vmem [shape: bf16[32,32], index: 3, kind: input, shape index: {}]
  %s4 = inlined_call_operand.vmem [shape: f32[1,32], index: 4, kind: input, shape index: {}]
  %s5 = inlined_call_operand.vmem [shape: bf16[32,128], index: 5, kind: input, shape index: {}]
  %s6 = inlined_call_operand.vmem [shape: f32[1,128], index: 6, kind: input, shape index: {}]
  %s7 = inlined_call_operand.vmem [shape: bf16[128,8], index: 7, kind: input, shape index: {}]
  %s8 = inlined_call_operand.vmem [shape: f32[1024,8], index: 8, kind: output, shape index: {0}]
  %s9 = inlined_call_operand.hbm [shape: f32[1024,128], index: 9, kind: output, shape index: {1}]
  %10 = xla_tuple %s8, %s9
  %s11 = sld [smem:[#allocation0]]
  $region73: #{aen_forward.1} parent=0
    _
  %s13 = ssub.s32 1, %s11
  %s14 = scalar_select 0, %s13, %s11
  $region1: #{aen_forward.1} parent=0
    #allocation2 [shape = 'u8[262144]{0}', space=vmem, size = 0x40000, scoped, tag = 'output window, operand 1']
    #allocation3 [shape = 's32[2]{0}', space=sflag, size = 0x8, scoped, tag = 'scoped memory for aen_forward.1']
    %15 = vsyncpa [#allocation3], 0
    %s16 = scalar_lea.sflag [#allocation3], 1
    %17 = vsyncpa %s16, 0
    loop: start=0, step=1, limit=6
    $region2: #{aen_forward.1} parent=1 // loop_pre_header
      _
    $region3: #{aen_forward.1} parent=1 // loop_header
      %s19 = sphi 0, %s23
      %p20 = scmp.ge.s32.totalorder %s19, 6
      %s29 = sphi 0, %s31
      %s32 = sphi 0, %s29
      %s33 = sphi 0, %s32
      %s49 = sphi 0, %s33
      %s53 = sphi 0, %s53
      %s55 = sphi 0, %s53
      %s56 = sphi 0, %s55
      %s70 = sphi 0, %s56
      %s74 = sphi 0, %s74
      %s76 = sphi 0, %s74
      %s77 = sphi 0, %s76
      %s91 = sphi 0, %s77
      %s95 = sphi 0, %s95
      %s97 = sphi 0, %s95
      %s98 = sphi 0, %s97
      %s112 = sphi 0, %s98
      %s116 = sphi 0, %s116
      %s118 = sphi 0, %s116
      %s119 = sphi 0, %s118
      %s133 = sphi 0, %s119
      %s137 = sphi 0, %s137
      %s139 = sphi 0, %s137
      %s140 = sphi 0, %s139
      %s154 = sphi 0, %s140
      %s158 = sphi 0, %s158
      %s160 = sphi 0, %s158
      %s161 = sphi 0, %s160
      %s175 = sphi 0, %s161
      %s179 = sphi 0, %s179
      %s181 = sphi 0, %s179
      %s182 = sphi 0, %s181
      %s196 = sphi 0, %s182
      %s202 = sphi 0, %s204
      %s205 = sphi 0, %s202
      %s206 = sphi 0, %s205
      %s222 = sphi 0, %s206
      %s228 = sphi 0, %s230
      %s231 = sphi 0, %s228
      %s232 = sphi 0, %s231
      %s248 = sphi 0, %s232
    $region4: #{aen_forward.1} parent=1 // loop_header_branch
      %22 = sbr.rel (%p20) target = $region8
    $region5: #{aen_forward.1} parent=1 // loop_body
      %s24 = ssub.s32 %s19, 1
      %s25 = ssub.s32 %s19, 2
      %s26 = sadd.s32 %s19, 1
      %s27 = ssub.s32 %s19, %s26
      %p28 = scmp.eq.s32.totalorder %s27, 0
      %s30 = sadd.s32 %s29, 1
      %s31 = scalar_select %p28, %s29, %s30
      %p34 = pneg %p28
      %p35 = scmp.eq.s32.totalorder %s19, 3
      %p36 = por %p34, %p35
      %p37 = scmp.ne.s32.totalorder %s29, %s32
      %p38 = scmp.eq.s32.totalorder %s19, 0
      %p39 = por %p37, %p38
      %p40 = scmp.ne.s32.totalorder %s29, %s32
      %p41 = scmp.eq.s32.totalorder %s24, 3
      %p42 = por %p40, %p41
      %p43 = scmp.ne.s32.totalorder %s32, %s33
      %p44 = scmp.eq.s32.totalorder %s24, 0
      %p45 = por %p43, %p44
      %p46 = scmp.ne.s32.totalorder %s32, %s33
      %p47 = scmp.eq.s32.totalorder %s25, 3
      %p48 = por %p46, %p47
      %p50 = scmp.ne.s32.totalorder %s33, %s49
      %p51 = scmp.eq.s32.totalorder %s25, 0
      %p52 = por %p50, %p51
      %s54 = sadd.s32 %s53, 1
      %p57 = scmp.eq.s32.totalorder %s19, 3
      %p58 = scmp.ne.s32.totalorder %s53, %s55
      %p59 = scmp.eq.s32.totalorder %s19, 0
      %p60 = por %p58, %p59
      %p61 = scmp.ne.s32.totalorder %s53, %s55
      %p62 = scmp.eq.s32.totalorder %s24, 3
      %p63 = por %p61, %p62
      %p64 = scmp.ne.s32.totalorder %s55, %s56
      %p65 = scmp.eq.s32.totalorder %s24, 0
      %p66 = por %p64, %p65
      %p67 = scmp.ne.s32.totalorder %s55, %s56
      %p68 = scmp.eq.s32.totalorder %s25, 3
      %p69 = por %p67, %p68
      %p71 = scmp.ne.s32.totalorder %s56, %s70
      %p72 = scmp.eq.s32.totalorder %s25, 0
      %p73 = por %p71, %p72
      %s75 = sadd.s32 %s74, 1
      %p78 = scmp.eq.s32.totalorder %s19, 3
      %p79 = scmp.ne.s32.totalorder %s74, %s76
      %p80 = scmp.eq.s32.totalorder %s19, 0
      %p81 = por %p79, %p80
      %p82 = scmp.ne.s32.totalorder %s74, %s76
      %p83 = scmp.eq.s32.totalorder %s24, 3
      %p84 = por %p82, %p83
      %p85 = scmp.ne.s32.totalorder %s76, %s77
      %p86 = scmp.eq.s32.totalorder %s24, 0
      %p87 = por %p85, %p86
      %p88 = scmp.ne.s32.totalorder %s76, %s77
      %p89 = scmp.eq.s32.totalorder %s25, 3
      %p90 = por %p88, %p89
      %p92 = scmp.ne.s32.totalorder %s77, %s91
      %p93 = scmp.eq.s32.totalorder %s25, 0
      %p94 = por %p92, %p93
      %s96 = sadd.s32 %s95, 1
      %p99 = scmp.eq.s32.totalorder %s19, 3
      %p100 = scmp.ne.s32.totalorder %s95, %s97
      %p101 = scmp.eq.s32.totalorder %s19, 0
      %p102 = por %p100, %p101
      %p103 = scmp.ne.s32.totalorder %s95, %s97
      %p104 = scmp.eq.s32.totalorder %s24, 3
      %p105 = por %p103, %p104
      %p106 = scmp.ne.s32.totalorder %s97, %s98
      %p107 = scmp.eq.s32.totalorder %s24, 0
      %p108 = por %p106, %p107
      %p109 = scmp.ne.s32.totalorder %s97, %s98
      %p110 = scmp.eq.s32.totalorder %s25, 3
      %p111 = por %p109, %p110
      %p113 = scmp.ne.s32.totalorder %s98, %s112
      %p114 = scmp.eq.s32.totalorder %s25, 0
      %p115 = por %p113, %p114
      %s117 = sadd.s32 %s116, 1
      %p120 = scmp.eq.s32.totalorder %s19, 3
      %p121 = scmp.ne.s32.totalorder %s116, %s118
      %p122 = scmp.eq.s32.totalorder %s19, 0
      %p123 = por %p121, %p122
      %p124 = scmp.ne.s32.totalorder %s116, %s118
      %p125 = scmp.eq.s32.totalorder %s24, 3
      %p126 = por %p124, %p125
      %p127 = scmp.ne.s32.totalorder %s118, %s119
      %p128 = scmp.eq.s32.totalorder %s24, 0
      %p129 = por %p127, %p128
      %p130 = scmp.ne.s32.totalorder %s118, %s119
      %p131 = scmp.eq.s32.totalorder %s25, 3
      %p132 = por %p130, %p131
      %p134 = scmp.ne.s32.totalorder %s119, %s133
      %p135 = scmp.eq.s32.totalorder %s25, 0
      %p136 = por %p134, %p135
      %s138 = sadd.s32 %s137, 1
      %p141 = scmp.eq.s32.totalorder %s19, 3
      %p142 = scmp.ne.s32.totalorder %s137, %s139
      %p143 = scmp.eq.s32.totalorder %s19, 0
      %p144 = por %p142, %p143
      %p145 = scmp.ne.s32.totalorder %s137, %s139
      %p146 = scmp.eq.s32.totalorder %s24, 3
      %p147 = por %p145, %p146
      %p148 = scmp.ne.s32.totalorder %s139, %s140
      %p149 = scmp.eq.s32.totalorder %s24, 0
      %p150 = por %p148, %p149
      %p151 = scmp.ne.s32.totalorder %s139, %s140
      %p152 = scmp.eq.s32.totalorder %s25, 3
      %p153 = por %p151, %p152
      %p155 = scmp.ne.s32.totalorder %s140, %s154
      %p156 = scmp.eq.s32.totalorder %s25, 0
      %p157 = por %p155, %p156
      %s159 = sadd.s32 %s158, 1
      %p162 = scmp.eq.s32.totalorder %s19, 3
      %p163 = scmp.ne.s32.totalorder %s158, %s160
      %p164 = scmp.eq.s32.totalorder %s19, 0
      %p165 = por %p163, %p164
      %p166 = scmp.ne.s32.totalorder %s158, %s160
      %p167 = scmp.eq.s32.totalorder %s24, 3
      %p168 = por %p166, %p167
      %p169 = scmp.ne.s32.totalorder %s160, %s161
      %p170 = scmp.eq.s32.totalorder %s24, 0
      %p171 = por %p169, %p170
      %p172 = scmp.ne.s32.totalorder %s160, %s161
      %p173 = scmp.eq.s32.totalorder %s25, 3
      %p174 = por %p172, %p173
      %p176 = scmp.ne.s32.totalorder %s161, %s175
      %p177 = scmp.eq.s32.totalorder %s25, 0
      %p178 = por %p176, %p177
      %s180 = sadd.s32 %s179, 1
      %p183 = scmp.eq.s32.totalorder %s19, 3
      %p184 = scmp.ne.s32.totalorder %s179, %s181
      %p185 = scmp.eq.s32.totalorder %s19, 0
      %p186 = por %p184, %p185
      %p187 = scmp.ne.s32.totalorder %s179, %s181
      %p188 = scmp.eq.s32.totalorder %s24, 3
      %p189 = por %p187, %p188
      %p190 = scmp.ne.s32.totalorder %s181, %s182
      %p191 = scmp.eq.s32.totalorder %s24, 0
      %p192 = por %p190, %p191
      %p193 = scmp.ne.s32.totalorder %s181, %s182
      %p194 = scmp.eq.s32.totalorder %s25, 3
      %p195 = por %p193, %p194
      %p197 = scmp.ne.s32.totalorder %s182, %s196
      %p198 = scmp.eq.s32.totalorder %s25, 0
      %p199 = por %p197, %p198
      %s200 = ssub.s32 %s19, %s26
      %p201 = scmp.eq.s32.totalorder %s200, 0
      %s203 = sadd.s32 %s202, 1
      %s204 = scalar_select %p201, %s202, %s203
      %p207 = pneg %p201
      %p208 = scmp.eq.s32.totalorder %s19, 3
      %p209 = por %p207, %p208
      %p210 = scmp.ne.s32.totalorder %s202, %s205
      %p211 = scmp.eq.s32.totalorder %s19, 0
      %p212 = por %p210, %p211
      %p213 = scmp.ne.s32.totalorder %s202, %s205
      %p214 = scmp.eq.s32.totalorder %s24, 3
      %p215 = por %p213, %p214
      %p216 = scmp.ne.s32.totalorder %s205, %s206
      %p217 = scmp.eq.s32.totalorder %s24, 0
      %p218 = por %p216, %p217
      %p219 = scmp.ne.s32.totalorder %s205, %s206
      %p220 = scmp.eq.s32.totalorder %s25, 3
      %p221 = por %p219, %p220
      %p223 = scmp.ne.s32.totalorder %s206, %s222
      %p224 = scmp.eq.s32.totalorder %s25, 0
      %p225 = por %p223, %p224
      %s226 = ssub.s32 %s19, %s26
      %p227 = scmp.eq.s32.totalorder %s226, 0
      %s229 = sadd.s32 %s228, 1
      %s230 = scalar_select %p227, %s228, %s229
      %p233 = pneg %p227
      %p234 = scmp.eq.s32.totalorder %s19, 3
      %p235 = por %p233, %p234
      %p236 = scmp.ne.s32.totalorder %s228, %s231
      %p237 = scmp.eq.s32.totalorder %s19, 0
      %p238 = por %p236, %p237
      %p239 = scmp.ne.s32.totalorder %s228, %s231
      %p240 = scmp.eq.s32.totalorder %s24, 3
      %p241 = por %p239, %p240
      %p242 = scmp.ne.s32.totalorder %s231, %s232
      %p243 = scmp.eq.s32.totalorder %s24, 0
      %p244 = por %p242, %p243
      %p245 = scmp.ne.s32.totalorder %s231, %s232
      %p246 = scmp.eq.s32.totalorder %s25, 3
      %p247 = por %p245, %p246
      %p249 = scmp.ne.s32.totalorder %s232, %s248
      %p250 = scmp.eq.s32.totalorder %s25, 0
      %p251 = por %p249, %p250
      %p252 = scmp.le.s32.totalorder 1, %s19
      %p253 = scmp.lt.s32.totalorder %s19, 5
      %p254 = pnand %p252, %p253
      %p255 = pneg %p254
      // Predicated region
      $region9: #{aen_forward.1} parent=5 // pred_check
        _
      $region10: #{aen_forward.1} parent=5 // pred_check_branch
        %257 = sbr.rel (%p254) target = $region12
      $region11: #{aen_forward.1} parent=5 // pred_region
        %s258 = ssub.s32 %s19, 1
        // Predicated region
        $region13: #{aen_forward.1} parent=11 // pred_check
          %p259 = pneg %p66
        $region14: #{aen_forward.1} parent=11 // pred_check_branch
          %261 = sbr.rel (%p259) target = $region16
        $region15: #{aen_forward.1} parent=11 // pred_region
          _
        $region16: #{aen_forward.1} parent=11 // pred_fallthru
          _
        // Predicated region
        $region17: #{aen_forward.1} parent=11 // pred_check
          %p262 = pneg %p87
        $region18: #{aen_forward.1} parent=11 // pred_check_branch
          %264 = sbr.rel (%p262) target = $region20
        $region19: #{aen_forward.1} parent=11 // pred_region
          _
        $region20: #{aen_forward.1} parent=11 // pred_fallthru
          _
        // Predicated region
        $region21: #{aen_forward.1} parent=11 // pred_check
          %p265 = pneg %p108
        $region22: #{aen_forward.1} parent=11 // pred_check_branch
          %267 = sbr.rel (%p265) target = $region24
        $region23: #{aen_forward.1} parent=11 // pred_region
          _
        $region24: #{aen_forward.1} parent=11 // pred_fallthru
          _
        // Predicated region
        $region25: #{aen_forward.1} parent=11 // pred_check
          %p268 = pneg %p129
        $region26: #{aen_forward.1} parent=11 // pred_check_branch
          %270 = sbr.rel (%p268) target = $region28
        $region27: #{aen_forward.1} parent=11 // pred_region
          _
        $region28: #{aen_forward.1} parent=11 // pred_fallthru
          _
        // Predicated region
        $region29: #{aen_forward.1} parent=11 // pred_check
          %p271 = pneg %p150
        $region30: #{aen_forward.1} parent=11 // pred_check_branch
          %273 = sbr.rel (%p271) target = $region32
        $region31: #{aen_forward.1} parent=11 // pred_region
          _
        $region32: #{aen_forward.1} parent=11 // pred_fallthru
          _
        // Predicated region
        $region33: #{aen_forward.1} parent=11 // pred_check
          %p274 = pneg %p171
        $region34: #{aen_forward.1} parent=11 // pred_check_branch
          %276 = sbr.rel (%p274) target = $region36
        $region35: #{aen_forward.1} parent=11 // pred_region
          _
        $region36: #{aen_forward.1} parent=11 // pred_fallthru
          _
        // Predicated region
        $region37: #{aen_forward.1} parent=11 // pred_check
          %p277 = pneg %p192
        $region38: #{aen_forward.1} parent=11 // pred_check_branch
          %279 = sbr.rel (%p277) target = $region40
        $region39: #{aen_forward.1} parent=11 // pred_region
          _
        $region40: #{aen_forward.1} parent=11 // pred_fallthru
          _
      $region12: #{aen_forward.1} parent=5 // pred_fallthru
        _
      %p280 = scmp.lt.s32.totalorder %s19, 4
      // Predicated region
      $region41: #{aen_forward.1} parent=5 // pred_check
        %p281 = pneg %p280
      $region42: #{aen_forward.1} parent=5 // pred_check_branch
        %283 = sbr.rel (%p281) target = $region44
      $region43: #{aen_forward.1} parent=5 // pred_region
        // Predicated region
        $region45: #{aen_forward.1} parent=43 // pred_check
          %p284 = pneg %p39
        $region46: #{aen_forward.1} parent=43 // pred_check_branch
          %286 = sbr.rel (%p284) target = $region48
        $region47: #{aen_forward.1} parent=43 // pred_region
          %s287 = smul.u32 32, %s19
          %p288 = scmp.lt.s32.totalorder %s287, 127
          %s289 = scalar_select %p288, %s287, 127
          %s290 = smul.addr %s289, 8
          %s291 = scalar_lea.vmem %s0, %s290
          %s292 = smul.u32 32, %s19
        $region48: #{aen_forward.1} parent=43 // pred_fallthru
          _
      $region44: #{aen_forward.1} parent=5 // pred_fallthru
        _
      %p293 = scmp.le.s32.totalorder 1, %s19
      %p294 = scmp.lt.s32.totalorder %s19, 5
      %p295 = pnand %p293, %p294
      %p296 = pneg %p295
      // Predicated region
      $region49: #{aen_forward.1} parent=5 // pred_check
        _
      $region50: #{aen_forward.1} parent=5 // pred_check_branch
        %298 = sbr.rel (%p295) target = $region52
      $region51: #{aen_forward.1} parent=5 // pred_region
        %s299 = ssub.s32 %s19, 1
        %s300 = smul.u32 32, %s24
        %p301 = scmp.lt.s32.totalorder %s300, 127
        %s302 = scalar_select %p301, %s300, 127
        %s303 = smul.addr %s302, 8
        %s304 = scalar_lea.vmem %s0, %s303
        %p305 = pneg %p45
        %p306 = pneg %p42
        %p307 = pneg %p66
        %p308 = pneg %p63
        %p309 = pneg %p87
        %p310 = pneg %p84
        %p311 = pneg %p108
        %p312 = pneg %p105
        %p313 = pneg %p129
        %p314 = pneg %p126
        %p315 = pneg %p150
        %p316 = pneg %p147
        %p317 = pneg %p171
        %p318 = pneg %p168
        %p319 = pneg %p192
        %p320 = pneg %p189
        %p321 = pneg %p218
        %p322 = pneg %p215
        %s323 = smul.u32 32, %s24
        %p324 = scmp.lt.s32.totalorder %s323, 127
        %s325 = scalar_select %p324, %s323, 127
        %s326 = smul.addr %s325, 8
        %s327 = scalar_lea.vmem %s8, %s326
        %p328 = pneg %p244
        %p329 = pneg %p241
        %s330 = sand.u32 %s231, 1
        %s331 = scalar_lea.sflag [#allocation3], %s330
        %s332 = sand.u32 %s231, 1
        %s333 = smul.addr %s332, 256
        %s334 = scalar_lea.vmem [#allocation2], %s333
        %s335 = smul.u32 32, %s24
        %p336 = scmp.lt.s32.totalorder %s335, 127
        %s337 = scalar_select %p336, %s335, 127
        %s338 = smul.addr %s337, 8
        %s339 = scalar_lea.vmem %s0, %s338
        %s340 = smul.u32 32, %s24
        %s341 = smul.u32 32, %s24
        %p342 = scmp.lt.s32.totalorder %s341, 127
        %s343 = scalar_select %p342, %s341, 127
        %s344 = smul.addr %s343, 8
        %s345 = scalar_lea.vmem %s8, %s344
        %s346 = smul.u32 32, %s24
        %s347 = smul.u32 32, %s24
        %v349 = vld [vmem:[%s339] sm:$0xff]
        %v350 = vld [vmem:[%s339 + $0x8] sm:$0xff]
        %v351 = vld [vmem:[%s339 + $0x10] sm:$0xff]
        %v352 = vld [vmem:[%s339 + $0x18] sm:$0xff]
        %v353 = vld [vmem:[%s339 + $0x20] sm:$0xff]
        %v354 = vld [vmem:[%s339 + $0x28] sm:$0xff]
        %v355 = vld [vmem:[%s339 + $0x30] sm:$0xff]
        %v356 = vld [vmem:[%s339 + $0x38] sm:$0xff]
        %v357 = vld [vmem:[%s339 + $0x40] sm:$0xff]
        %v358 = vld [vmem:[%s339 + $0x48] sm:$0xff]
        %v359 = vld [vmem:[%s339 + $0x50] sm:$0xff]
        %v360 = vld [vmem:[%s339 + $0x58] sm:$0xff]
        %v361 = vld [vmem:[%s339 + $0x60] sm:$0xff]
        %v362 = vld [vmem:[%s339 + $0x68] sm:$0xff]
        %v363 = vld [vmem:[%s339 + $0x70] sm:$0xff]
        %v364 = vld [vmem:[%s339 + $0x78] sm:$0xff]
        %v365 = vld [vmem:[%s339 + $0x80] sm:$0xff]
        %v366 = vld [vmem:[%s339 + $0x88] sm:$0xff]
        %v367 = vld [vmem:[%s339 + $0x90] sm:$0xff]
        %v368 = vld [vmem:[%s339 + $0x98] sm:$0xff]
        %v369 = vld [vmem:[%s339 + $0xa0] sm:$0xff]
        %v370 = vld [vmem:[%s339 + $0xa8] sm:$0xff]
        %v371 = vld [vmem:[%s339 + $0xb0] sm:$0xff]
        %v372 = vld [vmem:[%s339 + $0xb8] sm:$0xff]
        %v373 = vld [vmem:[%s339 + $0xc0] sm:$0xff]
        %v374 = vld [vmem:[%s339 + $0xc8] sm:$0xff]
        %v375 = vld [vmem:[%s339 + $0xd0] sm:$0xff]
        %v376 = vld [vmem:[%s339 + $0xd8] sm:$0xff]
        %v377 = vld [vmem:[%s339 + $0xe0] sm:$0xff]
        %v378 = vld [vmem:[%s339 + $0xe8] sm:$0xff]
        %v379 = vld [vmem:[%s339 + $0xf0] sm:$0xff]
        %v380 = vld [vmem:[%s339 + $0xf8] sm:$0xff]
        %v381 = vpack.c.bf16 %v350, %v349
        %v382 = vpack.c.bf16 %v352, %v351
        %v383 = vpack.c.bf16 %v354, %v353
        %v384 = vpack.c.bf16 %v356, %v355
        %v385 = vpack.c.bf16 %v358, %v357
        %v386 = vpack.c.bf16 %v360, %v359
        %v387 = vpack.c.bf16 %v362, %v361
        %v388 = vpack.c.bf16 %v364, %v363
        %v389 = vpack.c.bf16 %v366, %v365
        %v390 = vpack.c.bf16 %v368, %v367
        %v391 = vpack.c.bf16 %v370, %v369
        %v392 = vpack.c.bf16 %v372, %v371
        %v393 = vpack.c.bf16 %v374, %v373
        %v394 = vpack.c.bf16 %v376, %v375
        %v395 = vpack.c.bf16 %v378, %v377
        %v396 = vpack.c.bf16 %v380, %v379
        %v397 = vld [vmem:[%s1] sm:$0xf]
        %v398 = vld [vmem:[%s1 + $0x4] sm:$0xf]
        %v399 = vld [vmem:[%s1 + $0x8] sm:$0xf]
        %v400 = vld [vmem:[%s1 + $0xc] sm:$0xf]
        %v401 = vld [vmem:[%s2] sm:$0x1]
        %v403 = vlaneseq
        %v404 = vshrl.u32 %v403, 7
        %v405 = vsub.s32 0, %v404
        %v406 = vrot.slane %v401, %v405
        %v412 = vunpack.c.l.b16 %v397
        %v413 = vunpack.c.l.b16 %v398
        %v414 = vunpack.c.l.b16 %v399
        %v415 = vunpack.c.l.b16 %v400
        %v416 = vpack.c.b16 %v413, %v412
        %v417 = vpack.c.b16 %v415, %v414
        %vm420 = vcmask 261120
        %v422 = vsel %vm420, %v381, 0
        %v425 = vsel %vm420, %v382, 0
        %v428 = vsel %vm420, %v383, 0
        %v431 = vsel %vm420, %v384, 0
        %v434 = vsel %vm420, %v385, 0
        %v437 = vsel %vm420, %v386, 0
        %v440 = vsel %vm420, %v387, 0
        %v443 = vsel %vm420, %v388, 0
        %v446 = vsel %vm420, %v389, 0
        %v449 = vsel %vm420, %v390, 0
        %v452 = vsel %vm420, %v391, 0
        %v455 = vsel %vm420, %v392, 0
        %v458 = vsel %vm420, %v393, 0
        %v461 = vsel %vm420, %v394, 0
        %v464 = vsel %vm420, %v395, 0
        %v467 = vsel %vm420, %v396, 0
        %469 = vmatprep.subr.bf16.mxu0 0
        %470 = vmatpush1.bf16.msra.mxu0 0
        %471 = vmatprep.subr.bf16.mxu0 0
        %472 = vmatpush1.bf16.msra.mxu0 0
        %473 = vmatprep.subr.bf16.mxu0 0
        %474 = vmatpush1.bf16.msra.mxu0 0
        %475 = vmatprep.subr.bf16.mxu0 0
        %476 = vmatpush1.bf16.msra.mxu0 0
        %477 = vmatprep.subr.bf16.mxu0 0
        %478 = vmatpush1.bf16.msra.mxu0 0
        %479 = vmatprep.subr.bf16.mxu0 0
        %480 = vmatpush1.bf16.msra.mxu0 0
        %481 = vmatprep.subr.bf16.mxu0 0
        %482 = vmatpush1.bf16.msra.mxu0 %v417
        %483 = vmatprep.subr.bf16.mxu0 0
        %484 = vmatpush1.bf16.msra.mxu0 %v416
        %485 = vmatprep.subr.bf16.mxu0 0
        %486 = vmatpush2.bf16.msra.mxu0 0
        %487 = vmatprep.subr.bf16.mxu0 0
        %488 = vmatpush2.bf16.msra.mxu0 0
        %489 = vmatprep.subr.bf16.mxu0 0
        %490 = vmatpush2.bf16.msra.mxu0 0
        %491 = vmatprep.subr.bf16.mxu0 0
        %492 = vmatpush2.bf16.msra.mxu0 0
        %493 = vmatprep.subr.bf16.mxu0 0
        %494 = vmatpush2.bf16.msra.mxu0 0
        %495 = vmatprep.subr.bf16.mxu0 0
        %496 = vmatpush2.bf16.msra.mxu0 0
        %497 = vmatprep.subr.bf16.mxu0 0
        %498 = vmatpush2.bf16.msra.mxu0 0
        %499 = vmatprep.subr.bf16.mxu0 0
        %500 = vmatpush2.bf16.msra.mxu0 0
        %501 = vmatprep.mubr.bf16.mxu0 0
        %502 = vmatmul.mubr.bf16.gmra.mxu0 %v422
        %v503 = vpop.f32.mrf.mxu0
        %v504 = vadd.f32 %v406, %v503
        %v505 = vpop.f32.mrf.mxu0
        %v506 = vpop.f32.mrf.mxu0
        %v507 = vadd.f32 %v406, %v506
        %v508 = vpop.f32.mrf.mxu0
        %509 = vmatprep.mubr.bf16.mxu0 0
        %510 = vmatmul.mubr.bf16.gmra.mxu0 %v425
        %v511 = vpop.f32.mrf.mxu0
        %v512 = vadd.f32 %v406, %v511
        %v513 = vpop.f32.mrf.mxu0
        %v514 = vpop.f32.mrf.mxu0
        %v515 = vadd.f32 %v406, %v514
        %v516 = vpop.f32.mrf.mxu0
        %517 = vmatprep.mubr.bf16.mxu0 0
        %518 = vmatmul.mubr.bf16.gmra.mxu0 %v428
        %v519 = vpop.f32.mrf.mxu0
        %v520 = vadd.f32 %v406, %v519
        %v521 = vpop.f32.mrf.mxu0
        %v522 = vpop.f32.mrf.mxu0
        %v523 = vadd.f32 %v406, %v522
        %v524 = vpop.f32.mrf.mxu0
        %525 = vmatprep.mubr.bf16.mxu0 0
        %526 = vmatmul.mubr.bf16.gmra.mxu0 %v431
        %v527 = vpop.f32.mrf.mxu0
        %v528 = vadd.f32 %v406, %v527
        %v529 = vpop.f32.mrf.mxu0
        %v530 = vpop.f32.mrf.mxu0
        %v531 = vadd.f32 %v406, %v530
        %v532 = vpop.f32.mrf.mxu0
        %533 = vmatprep.mubr.bf16.mxu0 0
        %534 = vmatmul.mubr.bf16.gmra.mxu0 %v434
        %v535 = vpop.f32.mrf.mxu0
        %v536 = vadd.f32 %v406, %v535
        %v537 = vpop.f32.mrf.mxu0
        %v538 = vpop.f32.mrf.mxu0
        %v539 = vadd.f32 %v406, %v538
        %v540 = vpop.f32.mrf.mxu0
        %541 = vmatprep.mubr.bf16.mxu0 0
        %542 = vmatmul.mubr.bf16.gmra.mxu0 %v437
        %v543 = vpop.f32.mrf.mxu0
        %v544 = vadd.f32 %v406, %v543
        %v545 = vpop.f32.mrf.mxu0
        %v546 = vpop.f32.mrf.mxu0
        %v547 = vadd.f32 %v406, %v546
        %v548 = vpop.f32.mrf.mxu0
        %549 = vmatprep.mubr.bf16.mxu0 0
        %550 = vmatmul.mubr.bf16.gmra.mxu0 %v440
        %v551 = vpop.f32.mrf.mxu0
        %v552 = vadd.f32 %v406, %v551
        %v553 = vpop.f32.mrf.mxu0
        %v554 = vpop.f32.mrf.mxu0
        %v555 = vadd.f32 %v406, %v554
        %v556 = vpop.f32.mrf.mxu0
        %557 = vmatprep.mubr.bf16.mxu0 0
        %558 = vmatmul.mubr.bf16.gmra.mxu0 %v443
        %v559 = vpop.f32.mrf.mxu0
        %v560 = vadd.f32 %v406, %v559
        %v561 = vpop.f32.mrf.mxu0
        %v562 = vpop.f32.mrf.mxu0
        %v563 = vadd.f32 %v406, %v562
        %v564 = vpop.f32.mrf.mxu0
        %565 = vmatprep.mubr.bf16.mxu0 0
        %566 = vmatmul.mubr.bf16.gmra.mxu0 %v446
        %v567 = vpop.f32.mrf.mxu0
        %v568 = vadd.f32 %v406, %v567
        %v569 = vpop.f32.mrf.mxu0
        %v570 = vpop.f32.mrf.mxu0
        %v571 = vadd.f32 %v406, %v570
        %v572 = vpop.f32.mrf.mxu0
        %573 = vmatprep.mubr.bf16.mxu0 0
        %574 = vmatmul.mubr.bf16.gmra.mxu0 %v449
        %v575 = vpop.f32.mrf.mxu0
        %v576 = vadd.f32 %v406, %v575
        %v577 = vpop.f32.mrf.mxu0
        %v578 = vpop.f32.mrf.mxu0
        %v579 = vadd.f32 %v406, %v578
        %v580 = vpop.f32.mrf.mxu0
        %581 = vmatprep.mubr.bf16.mxu0 0
        %582 = vmatmul.mubr.bf16.gmra.mxu0 %v452
        %v583 = vpop.f32.mrf.mxu0
        %v584 = vadd.f32 %v406, %v583
        %v585 = vpop.f32.mrf.mxu0
        %v586 = vpop.f32.mrf.mxu0
        %v587 = vadd.f32 %v406, %v586
        %v588 = vpop.f32.mrf.mxu0
        %589 = vmatprep.mubr.bf16.mxu0 0
        %590 = vmatmul.mubr.bf16.gmra.mxu0 %v455
        %v591 = vpop.f32.mrf.mxu0
        %v592 = vadd.f32 %v406, %v591
        %v593 = vpop.f32.mrf.mxu0
        %v594 = vpop.f32.mrf.mxu0
        %v595 = vadd.f32 %v406, %v594
        %v596 = vpop.f32.mrf.mxu0
        %597 = vmatprep.mubr.bf16.mxu0 0
        %598 = vmatmul.mubr.bf16.gmra.mxu0 %v458
        %v599 = vpop.f32.mrf.mxu0
        %v600 = vadd.f32 %v406, %v599
        %v601 = vpop.f32.mrf.mxu0
        %v602 = vpop.f32.mrf.mxu0
        %v603 = vadd.f32 %v406, %v602
        %v604 = vpop.f32.mrf.mxu0
        %605 = vmatprep.mubr.bf16.mxu0 0
        %606 = vmatmul.mubr.bf16.gmra.mxu0 %v461
        %v607 = vpop.f32.mrf.mxu0
        %v608 = vadd.f32 %v406, %v607
        %v609 = vpop.f32.mrf.mxu0
        %v610 = vpop.f32.mrf.mxu0
        %v611 = vadd.f32 %v406, %v610
        %v612 = vpop.f32.mrf.mxu0
        %613 = vmatprep.mubr.bf16.mxu0 0
        %614 = vmatmul.mubr.bf16.gmra.mxu0 %v464
        %v615 = vpop.f32.mrf.mxu0
        %v616 = vadd.f32 %v406, %v615
        %v617 = vpop.f32.mrf.mxu0
        %v618 = vpop.f32.mrf.mxu0
        %v619 = vadd.f32 %v406, %v618
        %v620 = vpop.f32.mrf.mxu0
        %621 = vmatprep.mubr.bf16.mxu0 0
        %622 = vmatmul.mubr.bf16.gmra.mxu0 %v467
        %v623 = vpop.f32.mrf.mxu0
        %v624 = vadd.f32 %v406, %v623
        %v625 = vpop.f32.mrf.mxu0
        %v626 = vpop.f32.mrf.mxu0
        %v627 = vadd.f32 %v406, %v626
        %v628 = vpop.f32.mrf.mxu0
        %629 = vdwg.mxu0
        %v630 = vmax.f32 %v504, 0.0
        %v631 = vmax.f32 %v507, 0.0
        %v632 = vmax.f32 %v512, 0.0
        %v633 = vmax.f32 %v515, 0.0
        %v634 = vmax.f32 %v520, 0.0
        %v635 = vmax.f32 %v523, 0.0
        %v636 = vmax.f32 %v528, 0.0
        %v637 = vmax.f32 %v531, 0.0
        %v638 = vmax.f32 %v536, 0.0
        %v639 = vmax.f32 %v539, 0.0
        %v640 = vmax.f32 %v544, 0.0
        %v641 = vmax.f32 %v547, 0.0
        %v642 = vmax.f32 %v552, 0.0
        %v643 = vmax.f32 %v555, 0.0
        %v644 = vmax.f32 %v560, 0.0
        %v645 = vmax.f32 %v563, 0.0
        %v646 = vmax.f32 %v568, 0.0
        %v647 = vmax.f32 %v571, 0.0
        %v648 = vmax.f32 %v576, 0.0
        %v649 = vmax.f32 %v579, 0.0
        %v650 = vmax.f32 %v584, 0.0
        %v651 = vmax.f32 %v587, 0.0
        %v652 = vmax.f32 %v592, 0.0
        %v653 = vmax.f32 %v595, 0.0
        %v654 = vmax.f32 %v600, 0.0
        %v655 = vmax.f32 %v603, 0.0
        %v656 = vmax.f32 %v608, 0.0
        %v657 = vmax.f32 %v611, 0.0
        %v658 = vmax.f32 %v616, 0.0
        %v659 = vmax.f32 %v619, 0.0
        %v660 = vmax.f32 %v624, 0.0
        %v661 = vmax.f32 %v627, 0.0
        %v662 = vpack.c.bf16 %v631, %v630
        %v663 = vpack.c.bf16 %v633, %v632
        %v664 = vpack.c.bf16 %v635, %v634
        %v665 = vpack.c.bf16 %v637, %v636
        %v666 = vpack.c.bf16 %v639, %v638
        %v667 = vpack.c.bf16 %v641, %v640
        %v668 = vpack.c.bf16 %v643, %v642
        %v669 = vpack.c.bf16 %v645, %v644
        %v670 = vpack.c.bf16 %v647, %v646
        %v671 = vpack.c.bf16 %v649, %v648
        %v672 = vpack.c.bf16 %v651, %v650
        %v673 = vpack.c.bf16 %v653, %v652
        %v674 = vpack.c.bf16 %v655, %v654
        %v675 = vpack.c.bf16 %v657, %v656
        %v676 = vpack.c.bf16 %v659, %v658
        %v677 = vpack.c.bf16 %v661, %v660
        %v678 = vld [vmem:[%s3] sm:$0xf]
        %v679 = vld [vmem:[%s3 + $0x4] sm:$0xf]
        %v680 = vld [vmem:[%s3 + $0x8] sm:$0xf]
        %v681 = vld [vmem:[%s3 + $0xc] sm:$0xf]
        %v682 = vld [vmem:[%s4] sm:$0x1]
        %v684 = vlaneseq
        %v685 = vshrl.u32 %v684, 7
        %v686 = vsub.s32 0, %v685
        %v687 = vrot.slane %v682, %v686
        %v693 = vunpack.c.l.b16 %v678
        %v694 = vunpack.c.l.b16 %v679
        %v695 = vunpack.c.l.b16 %v680
        %v696 = vunpack.c.l.b16 %v681
        %v697 = vpack.c.b16 %v694, %v693
        %v698 = vpack.c.b16 %v696, %v695
        %v702 = vsel %vm420, %v662, 0
        %v705 = vsel %vm420, %v663, 0
        %v708 = vsel %vm420, %v664, 0
        %v711 = vsel %vm420, %v665, 0
        %v714 = vsel %vm420, %v666, 0
        %v717 = vsel %vm420, %v667, 0
        %v720 = vsel %vm420, %v668, 0
        %v723 = vsel %vm420, %v669, 0
        %v726 = vsel %vm420, %v670, 0
        %v729 = vsel %vm420, %v671, 0
        %v732 = vsel %vm420, %v672, 0
        %v735 = vsel %vm420, %v673, 0
        %v738 = vsel %vm420, %v674, 0
        %v741 = vsel %vm420, %v675, 0
        %v744 = vsel %vm420, %v676, 0
        %v747 = vsel %vm420, %v677, 0
        %749 = vmatprep.subr.bf16.mxu0 0
        %750 = vmatpush1.bf16.msra.mxu0 0
        %751 = vmatprep.subr.bf16.mxu0 0
        %752 = vmatpush1.bf16.msra.mxu0 0
        %753 = vmatprep.subr.bf16.mxu0 0
        %754 = vmatpush1.bf16.msra.mxu0 0
        %755 = vmatprep.subr.bf16.mxu0 0
        %756 = vmatpush1.bf16.msra.mxu0 0
        %757 = vmatprep.subr.bf16.mxu0 0
        %758 = vmatpush1.bf16.msra.mxu0 0
        %759 = vmatprep.subr.bf16.mxu0 0
        %760 = vmatpush1.bf16.msra.mxu0 0
        %761 = vmatprep.subr.bf16.mxu0 0
        %762 = vmatpush1.bf16.msra.mxu0 %v698
        %763 = vmatprep.subr.bf16.mxu0 0
        %764 = vmatpush1.bf16.msra.mxu0 %v697
        %765 = vmatprep.subr.bf16.mxu0 0
        %766 = vmatpush2.bf16.msra.mxu0 0
        %767 = vmatprep.subr.bf16.mxu0 0
        %768 = vmatpush2.bf16.msra.mxu0 0
        %769 = vmatprep.subr.bf16.mxu0 0
        %770 = vmatpush2.bf16.msra.mxu0 0
        %771 = vmatprep.subr.bf16.mxu0 0
        %772 = vmatpush2.bf16.msra.mxu0 0
        %773 = vmatprep.subr.bf16.mxu0 0
        %774 = vmatpush2.bf16.msra.mxu0 0
        %775 = vmatprep.subr.bf16.mxu0 0
        %776 = vmatpush2.bf16.msra.mxu0 0
        %777 = vmatprep.subr.bf16.mxu0 0
        %778 = vmatpush2.bf16.msra.mxu0 0
        %779 = vmatprep.subr.bf16.mxu0 0
        %780 = vmatpush2.bf16.msra.mxu0 0
        %781 = vmatprep.mubr.bf16.mxu0 0
        %782 = vmatmul.mubr.bf16.gmra.mxu0 %v702
        %v783 = vpop.f32.mrf.mxu0
        %v784 = vadd.f32 %v687, %v783
        %v785 = vpop.f32.mrf.mxu0
        %v786 = vpop.f32.mrf.mxu0
        %v787 = vadd.f32 %v687, %v786
        %v788 = vpop.f32.mrf.mxu0
        %789 = vmatprep.mubr.bf16.mxu0 0
        %790 = vmatmul.mubr.bf16.gmra.mxu0 %v705
        %v791 = vpop.f32.mrf.mxu0
        %v792 = vadd.f32 %v687, %v791
        %v793 = vpop.f32.mrf.mxu0
        %v794 = vpop.f32.mrf.mxu0
        %v795 = vadd.f32 %v687, %v794
        %v796 = vpop.f32.mrf.mxu0
        %797 = vmatprep.mubr.bf16.mxu0 0
        %798 = vmatmul.mubr.bf16.gmra.mxu0 %v708
        %v799 = vpop.f32.mrf.mxu0
        %v800 = vadd.f32 %v687, %v799
        %v801 = vpop.f32.mrf.mxu0
        %v802 = vpop.f32.mrf.mxu0
        %v803 = vadd.f32 %v687, %v802
        %v804 = vpop.f32.mrf.mxu0
        %805 = vmatprep.mubr.bf16.mxu0 0
        %806 = vmatmul.mubr.bf16.gmra.mxu0 %v711
        %v807 = vpop.f32.mrf.mxu0
        %v808 = vadd.f32 %v687, %v807
        %v809 = vpop.f32.mrf.mxu0
        %v810 = vpop.f32.mrf.mxu0
        %v811 = vadd.f32 %v687, %v810
        %v812 = vpop.f32.mrf.mxu0
        %813 = vmatprep.mubr.bf16.mxu0 0
        %814 = vmatmul.mubr.bf16.gmra.mxu0 %v714
        %v815 = vpop.f32.mrf.mxu0
        %v816 = vadd.f32 %v687, %v815
        %v817 = vpop.f32.mrf.mxu0
        %v818 = vpop.f32.mrf.mxu0
        %v819 = vadd.f32 %v687, %v818
        %v820 = vpop.f32.mrf.mxu0
        %821 = vmatprep.mubr.bf16.mxu0 0
        %822 = vmatmul.mubr.bf16.gmra.mxu0 %v717
        %v823 = vpop.f32.mrf.mxu0
        %v824 = vadd.f32 %v687, %v823
        %v825 = vpop.f32.mrf.mxu0
        %v826 = vpop.f32.mrf.mxu0
        %v827 = vadd.f32 %v687, %v826
        %v828 = vpop.f32.mrf.mxu0
        %829 = vmatprep.mubr.bf16.mxu0 0
        %830 = vmatmul.mubr.bf16.gmra.mxu0 %v720
        %v831 = vpop.f32.mrf.mxu0
        %v832 = vadd.f32 %v687, %v831
        %v833 = vpop.f32.mrf.mxu0
        %v834 = vpop.f32.mrf.mxu0
        %v835 = vadd.f32 %v687, %v834
        %v836 = vpop.f32.mrf.mxu0
        %837 = vmatprep.mubr.bf16.mxu0 0
        %838 = vmatmul.mubr.bf16.gmra.mxu0 %v723
        %v839 = vpop.f32.mrf.mxu0
        %v840 = vadd.f32 %v687, %v839
        %v841 = vpop.f32.mrf.mxu0
        %v842 = vpop.f32.mrf.mxu0
        %v843 = vadd.f32 %v687, %v842
        %v844 = vpop.f32.mrf.mxu0
        %845 = vmatprep.mubr.bf16.mxu0 0
        %846 = vmatmul.mubr.bf16.gmra.mxu0 %v726
        %v847 = vpop.f32.mrf.mxu0
        %v848 = vadd.f32 %v687, %v847
        %v849 = vpop.f32.mrf.mxu0
        %v850 = vpop.f32.mrf.mxu0
        %v851 = vadd.f32 %v687, %v850
        %v852 = vpop.f32.mrf.mxu0
        %853 = vmatprep.mubr.bf16.mxu0 0
        %854 = vmatmul.mubr.bf16.gmra.mxu0 %v729
        %v855 = vpop.f32.mrf.mxu0
        %v856 = vadd.f32 %v687, %v855
        %v857 = vpop.f32.mrf.mxu0
        %v858 = vpop.f32.mrf.mxu0
        %v859 = vadd.f32 %v687, %v858
        %v860 = vpop.f32.mrf.mxu0
        %861 = vmatprep.mubr.bf16.mxu0 0
        %862 = vmatmul.mubr.bf16.gmra.mxu0 %v732
        %v863 = vpop.f32.mrf.mxu0
        %v864 = vadd.f32 %v687, %v863
        %v865 = vpop.f32.mrf.mxu0
        %v866 = vpop.f32.mrf.mxu0
        %v867 = vadd.f32 %v687, %v866
        %v868 = vpop.f32.mrf.mxu0
        %869 = vmatprep.mubr.bf16.mxu0 0
        %870 = vmatmul.mubr.bf16.gmra.mxu0 %v735
        %v871 = vpop.f32.mrf.mxu0
        %v872 = vadd.f32 %v687, %v871
        %v873 = vpop.f32.mrf.mxu0
        %v874 = vpop.f32.mrf.mxu0
        %v875 = vadd.f32 %v687, %v874
        %v876 = vpop.f32.mrf.mxu0
        %877 = vmatprep.mubr.bf16.mxu0 0
        %878 = vmatmul.mubr.bf16.gmra.mxu0 %v738
        %v879 = vpop.f32.mrf.mxu0
        %v880 = vadd.f32 %v687, %v879
        %v881 = vpop.f32.mrf.mxu0
        %v882 = vpop.f32.mrf.mxu0
        %v883 = vadd.f32 %v687, %v882
        %v884 = vpop.f32.mrf.mxu0
        %885 = vmatprep.mubr.bf16.mxu0 0
        %886 = vmatmul.mubr.bf16.gmra.mxu0 %v741
        %v887 = vpop.f32.mrf.mxu0
        %v888 = vadd.f32 %v687, %v887
        %v889 = vpop.f32.mrf.mxu0
        %v890 = vpop.f32.mrf.mxu0
        %v891 = vadd.f32 %v687, %v890
        %v892 = vpop.f32.mrf.mxu0
        %893 = vmatprep.mubr.bf16.mxu0 0
        %894 = vmatmul.mubr.bf16.gmra.mxu0 %v744
        %v895 = vpop.f32.mrf.mxu0
        %v896 = vadd.f32 %v687, %v895
        %v897 = vpop.f32.mrf.mxu0
        %v898 = vpop.f32.mrf.mxu0
        %v899 = vadd.f32 %v687, %v898
        %v900 = vpop.f32.mrf.mxu0
        %901 = vmatprep.mubr.bf16.mxu0 0
        %902 = vmatmul.mubr.bf16.gmra.mxu0 %v747
        %v903 = vpop.f32.mrf.mxu0
        %v904 = vadd.f32 %v687, %v903
        %v905 = vpop.f32.mrf.mxu0
        %v906 = vpop.f32.mrf.mxu0
        %v907 = vadd.f32 %v687, %v906
        %v908 = vpop.f32.mrf.mxu0
        %909 = vdwg.mxu0
        %v910 = vmax.f32 %v784, 0.0
        %v911 = vmax.f32 %v787, 0.0
        %v912 = vmax.f32 %v792, 0.0
        %v913 = vmax.f32 %v795, 0.0
        %v914 = vmax.f32 %v800, 0.0
        %v915 = vmax.f32 %v803, 0.0
        %v916 = vmax.f32 %v808, 0.0
        %v917 = vmax.f32 %v811, 0.0
        %v918 = vmax.f32 %v816, 0.0
        %v919 = vmax.f32 %v819, 0.0
        %v920 = vmax.f32 %v824, 0.0
        %v921 = vmax.f32 %v827, 0.0
        %v922 = vmax.f32 %v832, 0.0
        %v923 = vmax.f32 %v835, 0.0
        %v924 = vmax.f32 %v840, 0.0
        %v925 = vmax.f32 %v843, 0.0
        %v926 = vmax.f32 %v848, 0.0
        %v927 = vmax.f32 %v851, 0.0
        %v928 = vmax.f32 %v856, 0.0
        %v929 = vmax.f32 %v859, 0.0
        %v930 = vmax.f32 %v864, 0.0
        %v931 = vmax.f32 %v867, 0.0
        %v932 = vmax.f32 %v872, 0.0
        %v933 = vmax.f32 %v875, 0.0
        %v934 = vmax.f32 %v880, 0.0
        %v935 = vmax.f32 %v883, 0.0
        %v936 = vmax.f32 %v888, 0.0
        %v937 = vmax.f32 %v891, 0.0
        %v938 = vmax.f32 %v896, 0.0
        %v939 = vmax.f32 %v899, 0.0
        %v940 = vmax.f32 %v904, 0.0
        %v941 = vmax.f32 %v907, 0.0
        %v942 = vpack.c.bf16 %v911, %v910
        %v943 = vpack.c.bf16 %v913, %v912
        %v944 = vpack.c.bf16 %v915, %v914
        %v945 = vpack.c.bf16 %v917, %v916
        %v946 = vpack.c.bf16 %v919, %v918
        %v947 = vpack.c.bf16 %v921, %v920
        %v948 = vpack.c.bf16 %v923, %v922
        %v949 = vpack.c.bf16 %v925, %v924
        %v950 = vpack.c.bf16 %v927, %v926
        %v951 = vpack.c.bf16 %v929, %v928
        %v952 = vpack.c.bf16 %v931, %v930
        %v953 = vpack.c.bf16 %v933, %v932
        %v954 = vpack.c.bf16 %v935, %v934
        %v955 = vpack.c.bf16 %v937, %v936
        %v956 = vpack.c.bf16 %v939, %v938
        %v957 = vpack.c.bf16 %v941, %v940
        %v958 = vld [vmem:[%s5] sm:$0xf]
        %v959 = vld [vmem:[%s5 + $0x4] sm:$0xf]
        %v960 = vld [vmem:[%s5 + $0x8] sm:$0xf]
        %v961 = vld [vmem:[%s5 + $0xc] sm:$0xf]
        %v962 = vld [vmem:[%s6] sm:$0x1]
        %v964 = vlaneseq
        %v965 = vshrl.u32 %v964, 7
        %v966 = vsub.s32 0, %v965
        %v967 = vrot.slane %v962, %v966
        %v973 = vunpack.c.l.b16 %v958
        %v974 = vunpack.c.l.b16 %v959
        %v975 = vunpack.c.l.b16 %v960
        %v976 = vunpack.c.l.b16 %v961
        %v977 = vpack.c.b16 %v974, %v973
        %v978 = vpack.c.b16 %v976, %v975
        %v982 = vsel %vm420, %v942, 0
        %v985 = vsel %vm420, %v943, 0
        %v988 = vsel %vm420, %v944, 0
        %v991 = vsel %vm420, %v945, 0
        %v994 = vsel %vm420, %v946, 0
        %v997 = vsel %vm420, %v947, 0
        %v1000 = vsel %vm420, %v948, 0
        %v1003 = vsel %vm420, %v949, 0
        %v1006 = vsel %vm420, %v950, 0
        %v1009 = vsel %vm420, %v951, 0
        %v1012 = vsel %vm420, %v952, 0
        %v1015 = vsel %vm420, %v953, 0
        %v1018 = vsel %vm420, %v954, 0
        %v1021 = vsel %vm420, %v955, 0
        %v1024 = vsel %vm420, %v956, 0
        %v1027 = vsel %vm420, %v957, 0
        %1029 = vmatprep.subr.bf16.mxu0 0
        %1030 = vmatpush1.bf16.msra.mxu0 0
        %1031 = vmatprep.subr.bf16.mxu0 0
        %1032 = vmatpush1.bf16.msra.mxu0 0
        %1033 = vmatprep.subr.bf16.mxu0 0
        %1034 = vmatpush1.bf16.msra.mxu0 0
        %1035 = vmatprep.subr.bf16.mxu0 0
        %1036 = vmatpush1.bf16.msra.mxu0 0
        %1037 = vmatprep.subr.bf16.mxu0 0
        %1038 = vmatpush1.bf16.msra.mxu0 0
        %1039 = vmatprep.subr.bf16.mxu0 0
        %1040 = vmatpush1.bf16.msra.mxu0 0
        %1041 = vmatprep.subr.bf16.mxu0 0
        %1042 = vmatpush1.bf16.msra.mxu0 %v978
        %1043 = vmatprep.subr.bf16.mxu0 0
        %1044 = vmatpush1.bf16.msra.mxu0 %v977
        %1045 = vmatprep.subr.bf16.mxu0 0
        %1046 = vmatpush2.bf16.msra.mxu0 0
        %1047 = vmatprep.subr.bf16.mxu0 0
        %1048 = vmatpush2.bf16.msra.mxu0 0
        %1049 = vmatprep.subr.bf16.mxu0 0
        %1050 = vmatpush2.bf16.msra.mxu0 0
        %1051 = vmatprep.subr.bf16.mxu0 0
        %1052 = vmatpush2.bf16.msra.mxu0 0
        %1053 = vmatprep.subr.bf16.mxu0 0
        %1054 = vmatpush2.bf16.msra.mxu0 0
        %1055 = vmatprep.subr.bf16.mxu0 0
        %1056 = vmatpush2.bf16.msra.mxu0 0
        %1057 = vmatprep.subr.bf16.mxu0 0
        %1058 = vmatpush2.bf16.msra.mxu0 0
        %1059 = vmatprep.subr.bf16.mxu0 0
        %1060 = vmatpush2.bf16.msra.mxu0 0
        %1061 = vmatprep.mubr.bf16.mxu0 0
        %1062 = vmatmul.mubr.bf16.gmra.mxu0 %v982
        %v1063 = vpop.f32.mrf.mxu0
        %v1064 = vadd.f32 %v967, %v1063
        %v1065 = vpop.f32.mrf.mxu0
        %v1066 = vpop.f32.mrf.mxu0
        %v1067 = vadd.f32 %v967, %v1066
        %v1068 = vpop.f32.mrf.mxu0
        %1069 = vmatprep.mubr.bf16.mxu0 0
        %1070 = vmatmul.mubr.bf16.gmra.mxu0 %v985
        %v1071 = vpop.f32.mrf.mxu0
        %v1072 = vadd.f32 %v967, %v1071
        %v1073 = vpop.f32.mrf.mxu0
        %v1074 = vpop.f32.mrf.mxu0
        %v1075 = vadd.f32 %v967, %v1074
        %v1076 = vpop.f32.mrf.mxu0
        %1077 = vmatprep.mubr.bf16.mxu0 0
        %1078 = vmatmul.mubr.bf16.gmra.mxu0 %v988
        %v1079 = vpop.f32.mrf.mxu0
        %v1080 = vadd.f32 %v967, %v1079
        %v1081 = vpop.f32.mrf.mxu0
        %v1082 = vpop.f32.mrf.mxu0
        %v1083 = vadd.f32 %v967, %v1082
        %v1084 = vpop.f32.mrf.mxu0
        %1085 = vmatprep.mubr.bf16.mxu0 0
        %1086 = vmatmul.mubr.bf16.gmra.mxu0 %v991
        %v1087 = vpop.f32.mrf.mxu0
        %v1088 = vadd.f32 %v967, %v1087
        %v1089 = vpop.f32.mrf.mxu0
        %v1090 = vpop.f32.mrf.mxu0
        %v1091 = vadd.f32 %v967, %v1090
        %v1092 = vpop.f32.mrf.mxu0
        %1093 = vmatprep.mubr.bf16.mxu0 0
        %1094 = vmatmul.mubr.bf16.gmra.mxu0 %v994
        %v1095 = vpop.f32.mrf.mxu0
        %v1096 = vadd.f32 %v967, %v1095
        %v1097 = vpop.f32.mrf.mxu0
        %v1098 = vpop.f32.mrf.mxu0
        %v1099 = vadd.f32 %v967, %v1098
        %v1100 = vpop.f32.mrf.mxu0
        %1101 = vmatprep.mubr.bf16.mxu0 0
        %1102 = vmatmul.mubr.bf16.gmra.mxu0 %v997
        %v1103 = vpop.f32.mrf.mxu0
        %v1104 = vadd.f32 %v967, %v1103
        %v1105 = vpop.f32.mrf.mxu0
        %v1106 = vpop.f32.mrf.mxu0
        %v1107 = vadd.f32 %v967, %v1106
        %v1108 = vpop.f32.mrf.mxu0
        %1109 = vmatprep.mubr.bf16.mxu0 0
        %1110 = vmatmul.mubr.bf16.gmra.mxu0 %v1000
        %v1111 = vpop.f32.mrf.mxu0
        %v1112 = vadd.f32 %v967, %v1111
        %v1113 = vpop.f32.mrf.mxu0
        %v1114 = vpop.f32.mrf.mxu0
        %v1115 = vadd.f32 %v967, %v1114
        %v1116 = vpop.f32.mrf.mxu0
        %1117 = vmatprep.mubr.bf16.mxu0 0
        %1118 = vmatmul.mubr.bf16.gmra.mxu0 %v1003
        %v1119 = vpop.f32.mrf.mxu0
        %v1120 = vadd.f32 %v967, %v1119
        %v1121 = vpop.f32.mrf.mxu0
        %v1122 = vpop.f32.mrf.mxu0
        %v1123 = vadd.f32 %v967, %v1122
        %v1124 = vpop.f32.mrf.mxu0
        %1125 = vmatprep.mubr.bf16.mxu0 0
        %1126 = vmatmul.mubr.bf16.gmra.mxu0 %v1006
        %v1127 = vpop.f32.mrf.mxu0
        %v1128 = vadd.f32 %v967, %v1127
        %v1129 = vpop.f32.mrf.mxu0
        %v1130 = vpop.f32.mrf.mxu0
        %v1131 = vadd.f32 %v967, %v1130
        %v1132 = vpop.f32.mrf.mxu0
        %1133 = vmatprep.mubr.bf16.mxu0 0
        %1134 = vmatmul.mubr.bf16.gmra.mxu0 %v1009
        %v1135 = vpop.f32.mrf.mxu0
        %v1136 = vadd.f32 %v967, %v1135
        %v1137 = vpop.f32.mrf.mxu0
        %v1138 = vpop.f32.mrf.mxu0
        %v1139 = vadd.f32 %v967, %v1138
        %v1140 = vpop.f32.mrf.mxu0
        %1141 = vmatprep.mubr.bf16.mxu0 0
        %1142 = vmatmul.mubr.bf16.gmra.mxu0 %v1012
        %v1143 = vpop.f32.mrf.mxu0
        %v1144 = vadd.f32 %v967, %v1143
        %v1145 = vpop.f32.mrf.mxu0
        %v1146 = vpop.f32.mrf.mxu0
        %v1147 = vadd.f32 %v967, %v1146
        %v1148 = vpop.f32.mrf.mxu0
        %1149 = vmatprep.mubr.bf16.mxu0 0
        %1150 = vmatmul.mubr.bf16.gmra.mxu0 %v1015
        %v1151 = vpop.f32.mrf.mxu0
        %v1152 = vadd.f32 %v967, %v1151
        %v1153 = vpop.f32.mrf.mxu0
        %v1154 = vpop.f32.mrf.mxu0
        %v1155 = vadd.f32 %v967, %v1154
        %v1156 = vpop.f32.mrf.mxu0
        %1157 = vmatprep.mubr.bf16.mxu0 0
        %1158 = vmatmul.mubr.bf16.gmra.mxu0 %v1018
        %v1159 = vpop.f32.mrf.mxu0
        %v1160 = vadd.f32 %v967, %v1159
        %v1161 = vpop.f32.mrf.mxu0
        %v1162 = vpop.f32.mrf.mxu0
        %v1163 = vadd.f32 %v967, %v1162
        %v1164 = vpop.f32.mrf.mxu0
        %1165 = vmatprep.mubr.bf16.mxu0 0
        %1166 = vmatmul.mubr.bf16.gmra.mxu0 %v1021
        %v1167 = vpop.f32.mrf.mxu0
        %v1168 = vadd.f32 %v967, %v1167
        %v1169 = vpop.f32.mrf.mxu0
        %v1170 = vpop.f32.mrf.mxu0
        %v1171 = vadd.f32 %v967, %v1170
        %v1172 = vpop.f32.mrf.mxu0
        %1173 = vmatprep.mubr.bf16.mxu0 0
        %1174 = vmatmul.mubr.bf16.gmra.mxu0 %v1024
        %v1175 = vpop.f32.mrf.mxu0
        %v1176 = vadd.f32 %v967, %v1175
        %v1177 = vpop.f32.mrf.mxu0
        %v1178 = vpop.f32.mrf.mxu0
        %v1179 = vadd.f32 %v967, %v1178
        %v1180 = vpop.f32.mrf.mxu0
        %1181 = vmatprep.mubr.bf16.mxu0 0
        %1182 = vmatmul.mubr.bf16.gmra.mxu0 %v1027
        %v1183 = vpop.f32.mrf.mxu0
        %v1184 = vadd.f32 %v967, %v1183
        %v1185 = vpop.f32.mrf.mxu0
        %v1186 = vpop.f32.mrf.mxu0
        %v1187 = vadd.f32 %v967, %v1186
        %v1188 = vpop.f32.mrf.mxu0
        %1189 = vdwg.mxu0
        %v1190 = vmax.f32 %v1064, 0.0
        %v1191 = vmax.f32 %v1067, 0.0
        %v1192 = vmax.f32 %v1072, 0.0
        %v1193 = vmax.f32 %v1075, 0.0
        %v1194 = vmax.f32 %v1080, 0.0
        %v1195 = vmax.f32 %v1083, 0.0
        %v1196 = vmax.f32 %v1088, 0.0
        %v1197 = vmax.f32 %v1091, 0.0
        %v1198 = vmax.f32 %v1096, 0.0
        %v1199 = vmax.f32 %v1099, 0.0
        %v1200 = vmax.f32 %v1104, 0.0
        %v1201 = vmax.f32 %v1107, 0.0
        %v1202 = vmax.f32 %v1112, 0.0
        %v1203 = vmax.f32 %v1115, 0.0
        %v1204 = vmax.f32 %v1120, 0.0
        %v1205 = vmax.f32 %v1123, 0.0
        %v1206 = vmax.f32 %v1128, 0.0
        %v1207 = vmax.f32 %v1131, 0.0
        %v1208 = vmax.f32 %v1136, 0.0
        %v1209 = vmax.f32 %v1139, 0.0
        %v1210 = vmax.f32 %v1144, 0.0
        %v1211 = vmax.f32 %v1147, 0.0
        %v1212 = vmax.f32 %v1152, 0.0
        %v1213 = vmax.f32 %v1155, 0.0
        %v1214 = vmax.f32 %v1160, 0.0
        %v1215 = vmax.f32 %v1163, 0.0
        %v1216 = vmax.f32 %v1168, 0.0
        %v1217 = vmax.f32 %v1171, 0.0
        %v1218 = vmax.f32 %v1176, 0.0
        %v1219 = vmax.f32 %v1179, 0.0
        %v1220 = vmax.f32 %v1184, 0.0
        %v1221 = vmax.f32 %v1187, 0.0
        %1222 = vst [vmem:[%s334] sm:$0xff] %v1190
        %1223 = vst [vmem:[%s334 + $0x8] sm:$0xff] %v1191
        %1224 = vst [vmem:[%s334 + $0x10] sm:$0xff] %v1192
        %1225 = vst [vmem:[%s334 + $0x18] sm:$0xff] %v1193
        %1226 = vst [vmem:[%s334 + $0x20] sm:$0xff] %v1194
        %1227 = vst [vmem:[%s334 + $0x28] sm:$0xff] %v1195
        %1228 = vst [vmem:[%s334 + $0x30] sm:$0xff] %v1196
        %1229 = vst [vmem:[%s334 + $0x38] sm:$0xff] %v1197
        %1230 = vst [vmem:[%s334 + $0x40] sm:$0xff] %v1198
        %1231 = vst [vmem:[%s334 + $0x48] sm:$0xff] %v1199
        %1232 = vst [vmem:[%s334 + $0x50] sm:$0xff] %v1200
        %1233 = vst [vmem:[%s334 + $0x58] sm:$0xff] %v1201
        %1234 = vst [vmem:[%s334 + $0x60] sm:$0xff] %v1202
        %1235 = vst [vmem:[%s334 + $0x68] sm:$0xff] %v1203
        %1236 = vst [vmem:[%s334 + $0x70] sm:$0xff] %v1204
        %1237 = vst [vmem:[%s334 + $0x78] sm:$0xff] %v1205
        %1238 = vst [vmem:[%s334 + $0x80] sm:$0xff] %v1206
        %1239 = vst [vmem:[%s334 + $0x88] sm:$0xff] %v1207
        %1240 = vst [vmem:[%s334 + $0x90] sm:$0xff] %v1208
        %1241 = vst [vmem:[%s334 + $0x98] sm:$0xff] %v1209
        %1242 = vst [vmem:[%s334 + $0xa0] sm:$0xff] %v1210
        %1243 = vst [vmem:[%s334 + $0xa8] sm:$0xff] %v1211
        %1244 = vst [vmem:[%s334 + $0xb0] sm:$0xff] %v1212
        %1245 = vst [vmem:[%s334 + $0xb8] sm:$0xff] %v1213
        %1246 = vst [vmem:[%s334 + $0xc0] sm:$0xff] %v1214
        %1247 = vst [vmem:[%s334 + $0xc8] sm:$0xff] %v1215
        %1248 = vst [vmem:[%s334 + $0xd0] sm:$0xff] %v1216
        %1249 = vst [vmem:[%s334 + $0xd8] sm:$0xff] %v1217
        %1250 = vst [vmem:[%s334 + $0xe0] sm:$0xff] %v1218
        %1251 = vst [vmem:[%s334 + $0xe8] sm:$0xff] %v1219
        %1252 = vst [vmem:[%s334 + $0xf0] sm:$0xff] %v1220
        %1253 = vst [vmem:[%s334 + $0xf8] sm:$0xff] %v1221
        %v1254 = vpack.c.bf16 %v1191, %v1190
        %v1255 = vpack.c.bf16 %v1193, %v1192
        %v1256 = vpack.c.bf16 %v1195, %v1194
        %v1257 = vpack.c.bf16 %v1197, %v1196
        %v1258 = vpack.c.bf16 %v1199, %v1198
        %v1259 = vpack.c.bf16 %v1201, %v1200
        %v1260 = vpack.c.bf16 %v1203, %v1202
        %v1261 = vpack.c.bf16 %v1205, %v1204
        %v1262 = vpack.c.bf16 %v1207, %v1206
        %v1263 = vpack.c.bf16 %v1209, %v1208
        %v1264 = vpack.c.bf16 %v1211, %v1210
        %v1265 = vpack.c.bf16 %v1213, %v1212
        %v1266 = vpack.c.bf16 %v1215, %v1214
        %v1267 = vpack.c.bf16 %v1217, %v1216
        %v1268 = vpack.c.bf16 %v1219, %v1218
        %v1269 = vpack.c.bf16 %v1221, %v1220
        %v1270 = vld [vmem:[%s7] sm:$0xf]
        %v1271 = vld [vmem:[%s7 + $0x4] sm:$0xf]
        %v1272 = vld [vmem:[%s7 + $0x8] sm:$0xf]
        %v1273 = vld [vmem:[%s7 + $0xc] sm:$0xf]
        %v1274 = vld [vmem:[%s7 + $0x10] sm:$0xf]
        %v1275 = vld [vmem:[%s7 + $0x14] sm:$0xf]
        %v1276 = vld [vmem:[%s7 + $0x18] sm:$0xf]
        %v1277 = vld [vmem:[%s7 + $0x1c] sm:$0xf]
        %v1278 = vld [vmem:[%s7 + $0x20] sm:$0xf]
        %v1279 = vld [vmem:[%s7 + $0x24] sm:$0xf]
        %v1280 = vld [vmem:[%s7 + $0x28] sm:$0xf]
        %v1281 = vld [vmem:[%s7 + $0x2c] sm:$0xf]
        %v1282 = vld [vmem:[%s7 + $0x30] sm:$0xf]
        %v1283 = vld [vmem:[%s7 + $0x34] sm:$0xf]
        %v1284 = vld [vmem:[%s7 + $0x38] sm:$0xf]
        %v1285 = vld [vmem:[%s7 + $0x3c] sm:$0xf]
        %v1302 = vunpack.c.l.b16 %v1270
        %v1303 = vunpack.c.l.b16 %v1271
        %v1304 = vunpack.c.l.b16 %v1272
        %v1305 = vunpack.c.l.b16 %v1273
        %v1306 = vunpack.c.l.b16 %v1274
        %v1307 = vunpack.c.l.b16 %v1275
        %v1308 = vunpack.c.l.b16 %v1276
        %v1309 = vunpack.c.l.b16 %v1277
        %v1310 = vunpack.c.l.b16 %v1278
        %v1311 = vunpack.c.l.b16 %v1279
        %v1312 = vunpack.c.l.b16 %v1280
        %v1313 = vunpack.c.l.b16 %v1281
        %v1314 = vunpack.c.l.b16 %v1282
        %v1315 = vunpack.c.l.b16 %v1283
        %v1316 = vunpack.c.l.b16 %v1284
        %v1317 = vunpack.c.l.b16 %v1285
        %v1318 = vpack.c.b16 %v1303, %v1302
        %v1319 = vpack.c.b16 %v1305, %v1304
        %v1320 = vpack.c.b16 %v1307, %v1306
        %v1321 = vpack.c.b16 %v1309, %v1308
        %v1322 = vpack.c.b16 %v1311, %v1310
        %v1323 = vpack.c.b16 %v1313, %v1312
        %v1324 = vpack.c.b16 %v1315, %v1314
        %v1325 = vpack.c.b16 %v1317, %v1316
        %1334 = vmatprep.subr.bf16.mxu0 0
        %1335 = vmatpush1.bf16.msra.mxu0 %v1325
        %1336 = vmatprep.subr.bf16.mxu0 0
        %1337 = vmatpush1.bf16.msra.mxu0 %v1324
        %1338 = vmatprep.subr.bf16.mxu0 0
        %1339 = vmatpush1.bf16.msra.mxu0 %v1323
        %1340 = vmatprep.subr.bf16.mxu0 0
        %1341 = vmatpush1.bf16.msra.mxu0 %v1322
        %1342 = vmatprep.subr.bf16.mxu0 0
        %1343 = vmatpush1.bf16.msra.mxu0 %v1321
        %1344 = vmatprep.subr.bf16.mxu0 0
        %1345 = vmatpush1.bf16.msra.mxu0 %v1320
        %1346 = vmatprep.subr.bf16.mxu0 0
        %1347 = vmatpush1.bf16.msra.mxu0 %v1319
        %1348 = vmatprep.subr.bf16.mxu0 0
        %1349 = vmatpush1.bf16.msra.mxu0 %v1318
        %1350 = vmatprep.subr.bf16.mxu0 0
        %1351 = vmatpush2.bf16.msra.mxu0 0
        %1352 = vmatprep.subr.bf16.mxu0 0
        %1353 = vmatpush2.bf16.msra.mxu0 0
        %1354 = vmatprep.subr.bf16.mxu0 0
        %1355 = vmatpush2.bf16.msra.mxu0 0
        %1356 = vmatprep.subr.bf16.mxu0 0
        %1357 = vmatpush2.bf16.msra.mxu0 0
        %1358 = vmatprep.subr.bf16.mxu0 0
        %1359 = vmatpush2.bf16.msra.mxu0 0
        %1360 = vmatprep.subr.bf16.mxu0 0
        %1361 = vmatpush2.bf16.msra.mxu0 0
        %1362 = vmatprep.subr.bf16.mxu0 0
        %1363 = vmatpush2.bf16.msra.mxu0 0
        %1364 = vmatprep.subr.bf16.mxu0 0
        %1365 = vmatpush2.bf16.msra.mxu0 0
        %1366 = vmatprep.mubr.bf16.mxu0 0
        %1367 = vmatmul.mubr.bf16.gmra.mxu0 %v1254
        %v1368 = vpop.f32.mrf.mxu0
        %v1369 = vadd.f32 0.0, %v1368
        %v1370 = vpop.f32.mrf.mxu0
        %v1371 = vpop.f32.mrf.mxu0
        %v1372 = vadd.f32 0.0, %v1371
        %v1373 = vpop.f32.mrf.mxu0
        %1374 = vmatprep.mubr.bf16.mxu0 0
        %1375 = vmatmul.mubr.bf16.gmra.mxu0 %v1255
        %v1376 = vpop.f32.mrf.mxu0
        %v1377 = vadd.f32 0.0, %v1376
        %v1378 = vpop.f32.mrf.mxu0
        %v1379 = vpop.f32.mrf.mxu0
        %v1380 = vadd.f32 0.0, %v1379
        %v1381 = vpop.f32.mrf.mxu0
        %1382 = vmatprep.mubr.bf16.mxu0 0
        %1383 = vmatmul.mubr.bf16.gmra.mxu0 %v1256
        %v1384 = vpop.f32.mrf.mxu0
        %v1385 = vadd.f32 0.0, %v1384
        %v1386 = vpop.f32.mrf.mxu0
        %v1387 = vpop.f32.mrf.mxu0
        %v1388 = vadd.f32 0.0, %v1387
        %v1389 = vpop.f32.mrf.mxu0
        %1390 = vmatprep.mubr.bf16.mxu0 0
        %1391 = vmatmul.mubr.bf16.gmra.mxu0 %v1257
        %v1392 = vpop.f32.mrf.mxu0
        %v1393 = vadd.f32 0.0, %v1392
        %v1394 = vpop.f32.mrf.mxu0
        %v1395 = vpop.f32.mrf.mxu0
        %v1396 = vadd.f32 0.0, %v1395
        %v1397 = vpop.f32.mrf.mxu0
        %1398 = vmatprep.mubr.bf16.mxu0 0
        %1399 = vmatmul.mubr.bf16.gmra.mxu0 %v1258
        %v1400 = vpop.f32.mrf.mxu0
        %v1401 = vadd.f32 0.0, %v1400
        %v1402 = vpop.f32.mrf.mxu0
        %v1403 = vpop.f32.mrf.mxu0
        %v1404 = vadd.f32 0.0, %v1403
        %v1405 = vpop.f32.mrf.mxu0
        %1406 = vmatprep.mubr.bf16.mxu0 0
        %1407 = vmatmul.mubr.bf16.gmra.mxu0 %v1259
        %v1408 = vpop.f32.mrf.mxu0
        %v1409 = vadd.f32 0.0, %v1408
        %v1410 = vpop.f32.mrf.mxu0
        %v1411 = vpop.f32.mrf.mxu0
        %v1412 = vadd.f32 0.0, %v1411
        %v1413 = vpop.f32.mrf.mxu0
        %1414 = vmatprep.mubr.bf16.mxu0 0
        %1415 = vmatmul.mubr.bf16.gmra.mxu0 %v1260
        %v1416 = vpop.f32.mrf.mxu0
        %v1417 = vadd.f32 0.0, %v1416
        %v1418 = vpop.f32.mrf.mxu0
        %v1419 = vpop.f32.mrf.mxu0
        %v1420 = vadd.f32 0.0, %v1419
        %v1421 = vpop.f32.mrf.mxu0
        %1422 = vmatprep.mubr.bf16.mxu0 0
        %1423 = vmatmul.mubr.bf16.gmra.mxu0 %v1261
        %v1424 = vpop.f32.mrf.mxu0
        %v1425 = vadd.f32 0.0, %v1424
        %v1426 = vpop.f32.mrf.mxu0
        %v1427 = vpop.f32.mrf.mxu0
        %v1428 = vadd.f32 0.0, %v1427
        %v1429 = vpop.f32.mrf.mxu0
        %1430 = vmatprep.mubr.bf16.mxu0 0
        %1431 = vmatmul.mubr.bf16.gmra.mxu0 %v1262
        %v1432 = vpop.f32.mrf.mxu0
        %v1433 = vadd.f32 0.0, %v1432
        %v1434 = vpop.f32.mrf.mxu0
        %v1435 = vpop.f32.mrf.mxu0
        %v1436 = vadd.f32 0.0, %v1435
        %v1437 = vpop.f32.mrf.mxu0
        %1438 = vmatprep.mubr.bf16.mxu0 0
        %1439 = vmatmul.mubr.bf16.gmra.mxu0 %v1263
        %v1440 = vpop.f32.mrf.mxu0
        %v1441 = vadd.f32 0.0, %v1440
        %v1442 = vpop.f32.mrf.mxu0
        %v1443 = vpop.f32.mrf.mxu0
        %v1444 = vadd.f32 0.0, %v1443
        %v1445 = vpop.f32.mrf.mxu0
        %1446 = vmatprep.mubr.bf16.mxu0 0
        %1447 = vmatmul.mubr.bf16.gmra.mxu0 %v1264
        %v1448 = vpop.f32.mrf.mxu0
        %v1449 = vadd.f32 0.0, %v1448
        %v1450 = vpop.f32.mrf.mxu0
        %v1451 = vpop.f32.mrf.mxu0
        %v1452 = vadd.f32 0.0, %v1451
        %v1453 = vpop.f32.mrf.mxu0
        %1454 = vmatprep.mubr.bf16.mxu0 0
        %1455 = vmatmul.mubr.bf16.gmra.mxu0 %v1265
        %v1456 = vpop.f32.mrf.mxu0
        %v1457 = vadd.f32 0.0, %v1456
        %v1458 = vpop.f32.mrf.mxu0
        %v1459 = vpop.f32.mrf.mxu0
        %v1460 = vadd.f32 0.0, %v1459
        %v1461 = vpop.f32.mrf.mxu0
        %1462 = vmatprep.mubr.bf16.mxu0 0
        %1463 = vmatmul.mubr.bf16.gmra.mxu0 %v1266
        %v1464 = vpop.f32.mrf.mxu0
        %v1465 = vadd.f32 0.0, %v1464
        %v1466 = vpop.f32.mrf.mxu0
        %v1467 = vpop.f32.mrf.mxu0
        %v1468 = vadd.f32 0.0, %v1467
        %v1469 = vpop.f32.mrf.mxu0
        %1470 = vmatprep.mubr.bf16.mxu0 0
        %1471 = vmatmul.mubr.bf16.gmra.mxu0 %v1267
        %v1472 = vpop.f32.mrf.mxu0
        %v1473 = vadd.f32 0.0, %v1472
        %v1474 = vpop.f32.mrf.mxu0
        %v1475 = vpop.f32.mrf.mxu0
        %v1476 = vadd.f32 0.0, %v1475
        %v1477 = vpop.f32.mrf.mxu0
        %1478 = vmatprep.mubr.bf16.mxu0 0
        %1479 = vmatmul.mubr.bf16.gmra.mxu0 %v1268
        %v1480 = vpop.f32.mrf.mxu0
        %v1481 = vadd.f32 0.0, %v1480
        %v1482 = vpop.f32.mrf.mxu0
        %v1483 = vpop.f32.mrf.mxu0
        %v1484 = vadd.f32 0.0, %v1483
        %v1485 = vpop.f32.mrf.mxu0
        %1486 = vmatprep.mubr.bf16.mxu0 0
        %1487 = vmatmul.mubr.bf16.gmra.mxu0 %v1269
        %v1488 = vpop.f32.mrf.mxu0
        %v1489 = vadd.f32 0.0, %v1488
        %v1490 = vpop.f32.mrf.mxu0
        %v1491 = vpop.f32.mrf.mxu0
        %v1492 = vadd.f32 0.0, %v1491
        %v1493 = vpop.f32.mrf.mxu0
        %1494 = vdwg.mxu0
        %v1495 = vxor.u32 %v1369, 2147483648
        %v1496 = vxor.u32 %v1372, 2147483648
        %v1497 = vxor.u32 %v1377, 2147483648
        %v1498 = vxor.u32 %v1380, 2147483648
        %v1499 = vxor.u32 %v1385, 2147483648
        %v1500 = vxor.u32 %v1388, 2147483648
        %v1501 = vxor.u32 %v1393, 2147483648
        %v1502 = vxor.u32 %v1396, 2147483648
        %v1503 = vxor.u32 %v1401, 2147483648
        %v1504 = vxor.u32 %v1404, 2147483648
        %v1505 = vxor.u32 %v1409, 2147483648
        %v1506 = vxor.u32 %v1412, 2147483648
        %v1507 = vxor.u32 %v1417, 2147483648
        %v1508 = vxor.u32 %v1420, 2147483648
        %v1509 = vxor.u32 %v1425, 2147483648
        %v1510 = vxor.u32 %v1428, 2147483648
        %v1511 = vxor.u32 %v1433, 2147483648
        %v1512 = vxor.u32 %v1436, 2147483648
        %v1513 = vxor.u32 %v1441, 2147483648
        %v1514 = vxor.u32 %v1444, 2147483648
        %v1515 = vxor.u32 %v1449, 2147483648
        %v1516 = vxor.u32 %v1452, 2147483648
        %v1517 = vxor.u32 %v1457, 2147483648
        %v1518 = vxor.u32 %v1460, 2147483648
        %v1519 = vxor.u32 %v1465, 2147483648
        %v1520 = vxor.u32 %v1468, 2147483648
        %v1521 = vxor.u32 %v1473, 2147483648
        %v1522 = vxor.u32 %v1476, 2147483648
        %v1523 = vxor.u32 %v1481, 2147483648
        %v1524 = vxor.u32 %v1484, 2147483648
        %v1525 = vxor.u32 %v1489, 2147483648
        %v1526 = vxor.u32 %v1492, 2147483648
        %v1527 = vmul.f32 %v1495, 1.442695
        %v1528 = vpow.pop %v1527
        %v1529 = vmul.f32 %v1496, 1.442695
        %v1530 = vpow.pop %v1529
        %v1531 = vmul.f32 %v1497, 1.442695
        %v1532 = vpow.pop %v1531
        %v1533 = vmul.f32 %v1498, 1.442695
        %v1534 = vpow.pop %v1533
        %v1535 = vmul.f32 %v1499, 1.442695
        %v1536 = vpow.pop %v1535
        %v1537 = vmul.f32 %v1500, 1.442695
        %v1538 = vpow.pop %v1537
        %v1539 = vmul.f32 %v1501, 1.442695
        %v1540 = vpow.pop %v1539
        %v1541 = vmul.f32 %v1502, 1.442695
        %v1542 = vpow.pop %v1541
        %v1543 = vmul.f32 %v1503, 1.442695
        %v1544 = vpow.pop %v1543
        %v1545 = vmul.f32 %v1504, 1.442695
        %v1546 = vpow.pop %v1545
        %v1547 = vmul.f32 %v1505, 1.442695
        %v1548 = vpow.pop %v1547
        %v1549 = vmul.f32 %v1506, 1.442695
        %v1550 = vpow.pop %v1549
        %v1551 = vmul.f32 %v1507, 1.442695
        %v1552 = vpow.pop %v1551
        %v1553 = vmul.f32 %v1508, 1.442695
        %v1554 = vpow.pop %v1553
        %v1555 = vmul.f32 %v1509, 1.442695
        %v1556 = vpow.pop %v1555
        %v1557 = vmul.f32 %v1510, 1.442695
        %v1558 = vpow.pop %v1557
        %v1559 = vmul.f32 %v1511, 1.442695
        %v1560 = vpow.pop %v1559
        %v1561 = vmul.f32 %v1512, 1.442695
        %v1562 = vpow.pop %v1561
        %v1563 = vmul.f32 %v1513, 1.442695
        %v1564 = vpow.pop %v1563
        %v1565 = vmul.f32 %v1514, 1.442695
        %v1566 = vpow.pop %v1565
        %v1567 = vmul.f32 %v1515, 1.442695
        %v1568 = vpow.pop %v1567
        %v1569 = vmul.f32 %v1516, 1.442695
        %v1570 = vpow.pop %v1569
        %v1571 = vmul.f32 %v1517, 1.442695
        %v1572 = vpow.pop %v1571
        %v1573 = vmul.f32 %v1518, 1.442695
        %v1574 = vpow.pop %v1573
        %v1575 = vmul.f32 %v1519, 1.442695
        %v1576 = vpow.pop %v1575
        %v1577 = vmul.f32 %v1520, 1.442695
        %v1578 = vpow.pop %v1577
        %v1579 = vmul.f32 %v1521, 1.442695
        %v1580 = vpow.pop %v1579
        %v1581 = vmul.f32 %v1522, 1.442695
        %v1582 = vpow.pop %v1581
        %v1583 = vmul.f32 %v1523, 1.442695
        %v1584 = vpow.pop %v1583
        %v1585 = vmul.f32 %v1524, 1.442695
        %v1586 = vpow.pop %v1585
        %v1587 = vmul.f32 %v1525, 1.442695
        %v1588 = vpow.pop %v1587
        %v1589 = vmul.f32 %v1526, 1.442695
        %v1590 = vpow.pop %v1589
        %v1591 = vadd.f32 %v1528, 1.0
        %v1592 = vadd.f32 %v1530, 1.0
        %v1593 = vadd.f32 %v1532, 1.0
        %v1594 = vadd.f32 %v1534, 1.0
        %v1595 = vadd.f32 %v1536, 1.0
        %v1596 = vadd.f32 %v1538, 1.0
        %v1597 = vadd.f32 %v1540, 1.0
        %v1598 = vadd.f32 %v1542, 1.0
        %v1599 = vadd.f32 %v1544, 1.0
        %v1600 = vadd.f32 %v1546, 1.0
        %v1601 = vadd.f32 %v1548, 1.0
        %v1602 = vadd.f32 %v1550, 1.0
        %v1603 = vadd.f32 %v1552, 1.0
        %v1604 = vadd.f32 %v1554, 1.0
        %v1605 = vadd.f32 %v1556, 1.0
        %v1606 = vadd.f32 %v1558, 1.0
        %v1607 = vadd.f32 %v1560, 1.0
        %v1608 = vadd.f32 %v1562, 1.0
        %v1609 = vadd.f32 %v1564, 1.0
        %v1610 = vadd.f32 %v1566, 1.0
        %v1611 = vadd.f32 %v1568, 1.0
        %v1612 = vadd.f32 %v1570, 1.0
        %v1613 = vadd.f32 %v1572, 1.0
        %v1614 = vadd.f32 %v1574, 1.0
        %v1615 = vadd.f32 %v1576, 1.0
        %v1616 = vadd.f32 %v1578, 1.0
        %v1617 = vadd.f32 %v1580, 1.0
        %v1618 = vadd.f32 %v1582, 1.0
        %v1619 = vadd.f32 %v1584, 1.0
        %v1620 = vadd.f32 %v1586, 1.0
        %v1621 = vadd.f32 %v1588, 1.0
        %v1622 = vadd.f32 %v1590, 1.0
        %v1623 = vrcp.pop %v1591
        %v1624 = vmul.f32 1.0, %v1623
        %v1625 = vrcp.pop %v1592
        %v1626 = vmul.f32 1.0, %v1625
        %v1627 = vrcp.pop %v1593
        %v1628 = vmul.f32 1.0, %v1627
        %v1629 = vrcp.pop %v1594
        %v1630 = vmul.f32 1.0, %v1629
        %v1631 = vrcp.pop %v1595
        %v1632 = vmul.f32 1.0, %v1631
        %v1633 = vrcp.pop %v1596
        %v1634 = vmul.f32 1.0, %v1633
        %v1635 = vrcp.pop %v1597
        %v1636 = vmul.f32 1.0, %v1635
        %v1637 = vrcp.pop %v1598
        %v1638 = vmul.f32 1.0, %v1637
        %v1639 = vrcp.pop %v1599
        %v1640 = vmul.f32 1.0, %v1639
        %v1641 = vrcp.pop %v1600
        %v1642 = vmul.f32 1.0, %v1641
        %v1643 = vrcp.pop %v1601
        %v1644 = vmul.f32 1.0, %v1643
        %v1645 = vrcp.pop %v1602
        %v1646 = vmul.f32 1.0, %v1645
        %v1647 = vrcp.pop %v1603
        %v1648 = vmul.f32 1.0, %v1647
        %v1649 = vrcp.pop %v1604
        %v1650 = vmul.f32 1.0, %v1649
        %v1651 = vrcp.pop %v1605
        %v1652 = vmul.f32 1.0, %v1651
        %v1653 = vrcp.pop %v1606
        %v1654 = vmul.f32 1.0, %v1653
        %v1655 = vrcp.pop %v1607
        %v1656 = vmul.f32 1.0, %v1655
        %v1657 = vrcp.pop %v1608
        %v1658 = vmul.f32 1.0, %v1657
        %v1659 = vrcp.pop %v1609
        %v1660 = vmul.f32 1.0, %v1659
        %v1661 = vrcp.pop %v1610
        %v1662 = vmul.f32 1.0, %v1661
        %v1663 = vrcp.pop %v1611
        %v1664 = vmul.f32 1.0, %v1663
        %v1665 = vrcp.pop %v1612
        %v1666 = vmul.f32 1.0, %v1665
        %v1667 = vrcp.pop %v1613
        %v1668 = vmul.f32 1.0, %v1667
        %v1669 = vrcp.pop %v1614
        %v1670 = vmul.f32 1.0, %v1669
        %v1671 = vrcp.pop %v1615
        %v1672 = vmul.f32 1.0, %v1671
        %v1673 = vrcp.pop %v1616
        %v1674 = vmul.f32 1.0, %v1673
        %v1675 = vrcp.pop %v1617
        %v1676 = vmul.f32 1.0, %v1675
        %v1677 = vrcp.pop %v1618
        %v1678 = vmul.f32 1.0, %v1677
        %v1679 = vrcp.pop %v1619
        %v1680 = vmul.f32 1.0, %v1679
        %v1681 = vrcp.pop %v1620
        %v1682 = vmul.f32 1.0, %v1681
        %v1683 = vrcp.pop %v1621
        %v1684 = vmul.f32 1.0, %v1683
        %v1685 = vrcp.pop %v1622
        %v1686 = vmul.f32 1.0, %v1685
        %vm1687 = vcmask 64512
        %1688 = vst.msk [vmem:[%s345] sm:$0xff] %vm1687, %v1624
        %1689 = vst.msk [vmem:[%s345 + $0x8] sm:$0xff] %vm1687, %v1626
        %1690 = vst.msk [vmem:[%s345 + $0x10] sm:$0xff] %vm1687, %v1628
        %1691 = vst.msk [vmem:[%s345 + $0x18] sm:$0xff] %vm1687, %v1630
        %1692 = vst.msk [vmem:[%s345 + $0x20] sm:$0xff] %vm1687, %v1632
        %1693 = vst.msk [vmem:[%s345 + $0x28] sm:$0xff] %vm1687, %v1634
        %1694 = vst.msk [vmem:[%s345 + $0x30] sm:$0xff] %vm1687, %v1636
        %1695 = vst.msk [vmem:[%s345 + $0x38] sm:$0xff] %vm1687, %v1638
        %1696 = vst.msk [vmem:[%s345 + $0x40] sm:$0xff] %vm1687, %v1640
        %1697 = vst.msk [vmem:[%s345 + $0x48] sm:$0xff] %vm1687, %v1642
        %1698 = vst.msk [vmem:[%s345 + $0x50] sm:$0xff] %vm1687, %v1644
        %1699 = vst.msk [vmem:[%s345 + $0x58] sm:$0xff] %vm1687, %v1646
        %1700 = vst.msk [vmem:[%s345 + $0x60] sm:$0xff] %vm1687, %v1648
        %1701 = vst.msk [vmem:[%s345 + $0x68] sm:$0xff] %vm1687, %v1650
        %1702 = vst.msk [vmem:[%s345 + $0x70] sm:$0xff] %vm1687, %v1652
        %1703 = vst.msk [vmem:[%s345 + $0x78] sm:$0xff] %vm1687, %v1654
        %1704 = vst.msk [vmem:[%s345 + $0x80] sm:$0xff] %vm1687, %v1656
        %1705 = vst.msk [vmem:[%s345 + $0x88] sm:$0xff] %vm1687, %v1658
        %1706 = vst.msk [vmem:[%s345 + $0x90] sm:$0xff] %vm1687, %v1660
        %1707 = vst.msk [vmem:[%s345 + $0x98] sm:$0xff] %vm1687, %v1662
        %1708 = vst.msk [vmem:[%s345 + $0xa0] sm:$0xff] %vm1687, %v1664
        %1709 = vst.msk [vmem:[%s345 + $0xa8] sm:$0xff] %vm1687, %v1666
        %1710 = vst.msk [vmem:[%s345 + $0xb0] sm:$0xff] %vm1687, %v1668
        %1711 = vst.msk [vmem:[%s345 + $0xb8] sm:$0xff] %vm1687, %v1670
        %1712 = vst.msk [vmem:[%s345 + $0xc0] sm:$0xff] %vm1687, %v1672
        %1713 = vst.msk [vmem:[%s345 + $0xc8] sm:$0xff] %vm1687, %v1674
        %1714 = vst.msk [vmem:[%s345 + $0xd0] sm:$0xff] %vm1687, %v1676
        %1715 = vst.msk [vmem:[%s345 + $0xd8] sm:$0xff] %vm1687, %v1678
        %1716 = vst.msk [vmem:[%s345 + $0xe0] sm:$0xff] %vm1687, %v1680
        %1717 = vst.msk [vmem:[%s345 + $0xe8] sm:$0xff] %vm1687, %v1682
        %1718 = vst.msk [vmem:[%s345 + $0xf0] sm:$0xff] %vm1687, %v1684
        %1719 = vst.msk [vmem:[%s345 + $0xf8] sm:$0xff] %vm1687, %v1686
        %s1720 = smul.u32 32, %s24
        %p1721 = scmp.lt.s32.totalorder %s1720, 127
        %s1722 = scalar_select %p1721, %s1720, 127
        %s1723 = smul.addr %s1722, 8
        %s1724 = scalar_lea.vmem %s8, %s1723
        %s1725 = sand.u32 %s231, 1
        %s1726 = scalar_lea.sflag [#allocation3], %s1725
        %s1727 = sand.u32 %s231, 1
        %s1728 = smul.addr %s1727, 256
        %s1729 = scalar_lea.vmem [#allocation2], %s1728
        // Predicated region
        $region53: #{aen_forward.1} parent=51 // pred_check
          %p1730 = pneg %p215
        $region54: #{aen_forward.1} parent=51 // pred_check_branch
          %1732 = sbr.rel (%p1730) target = $region56
        $region55: #{aen_forward.1} parent=51 // pred_region
          %s1733 = smul.u32 32, %s24
        $region56: #{aen_forward.1} parent=51 // pred_fallthru
          _
        // Predicated region
        $region57: #{aen_forward.1} parent=51 // pred_check
          %p1734 = pneg %p241
        $region58: #{aen_forward.1} parent=51 // pred_check_branch
          %1736 = sbr.rel (%p1734) target = $region60
        $region59: #{aen_forward.1} parent=51 // pred_region
          %s1737 = smul.u32 32, %s24
          %s1739 = ssub.s32 4096, 4096
          %1740 = vsyncadd %s1726, %s1739
          %s1741 = smul.addr %s1737, 128
          %s1742 = scalar_lea.hbm %s9, %s1741
          %s1743 = sshll.u32 %s1729, 4
          %s1744 = int_to_ptr.vmem [resolvable:$true] %s1743
          %1749 = dma.vmem_to_hbm [thread:$0]  %s1744, 4096, %s1742, %s1726, 128, 128, 8
        $region60: #{aen_forward.1} parent=51 // pred_fallthru
          _
      $region52: #{aen_forward.1} parent=5 // pred_fallthru
        _
      %p1750 = scmp.le.s32.totalorder 2, %s19
      // Predicated region
      $region61: #{aen_forward.1} parent=5 // pred_check
        %p1751 = pneg %p1750
      $region62: #{aen_forward.1} parent=5 // pred_check_branch
        %1753 = sbr.rel (%p1751) target = $region64
      $region63: #{aen_forward.1} parent=5 // pred_region
        %s1754 = ssub.s32 %s19, 2
        // Predicated region
        $region65: #{aen_forward.1} parent=63 // pred_check
          %p1755 = pneg %p221
        $region66: #{aen_forward.1} parent=63 // pred_check_branch
          %1757 = sbr.rel (%p1755) target = $region68
        $region67: #{aen_forward.1} parent=63 // pred_region
          %s1758 = smul.u32 32, %s25
          %p1759 = scmp.lt.s32.totalorder %s1758, 127
          %s1760 = scalar_select %p1759, %s1758, 127
          %s1761 = smul.addr %s1760, 8
          %s1762 = scalar_lea.vmem %s8, %s1761
        $region68: #{aen_forward.1} parent=63 // pred_fallthru
          _
        // Predicated region
        $region69: #{aen_forward.1} parent=63 // pred_check
          %p1763 = pneg %p247
        $region70: #{aen_forward.1} parent=63 // pred_check_branch
          %1765 = sbr.rel (%p1763) target = $region72
        $region71: #{aen_forward.1} parent=63 // pred_region
          %s1766 = sand.u32 %s232, 1
          %s1767 = scalar_lea.sflag [#allocation3], %s1766
          %s1768 = sand.u32 %s232, 1
          %s1769 = smul.addr %s1768, 256
          %s1770 = scalar_lea.vmem [#allocation2], %s1769
          %1771 = dma.done %s1767, 4096
        $region72: #{aen_forward.1} parent=63 // pred_fallthru
          _
      $region64: #{aen_forward.1} parent=5 // pred_fallthru
        _
    $region6: #{aen_forward.1} parent=1 // loop_footer
      %s23 = sadd.s32 1, %s19
    $region7: #{aen_forward.1} parent=1 // loop_footer_branch
      %18 = sbr.rel target = $region3
    $region8: #{aen_forward.1} parent=1 // loop_exit
      _
    %1772 = vsyncpa [#allocation3], 1
    %s1773 = scalar_lea.sflag [#allocation3], 1
    %1774 = vsyncpa %s1773, 1

</llo_original>
